<compile_context>
chip_gen: v6e
topology: v6e:2x2x1
jax: 0.10.0
libtpu: 0.0.40
codegen_flags: <defaults>
</compile_context>

<pallas_src>
import functools

import numpy as np
import jax
import jax.numpy as jnp
from jax.experimental import pallas as pl
from jax.experimental.pallas import tpu as pltpu

# --- SurroundInhibition parameters (deterministic module defaults) -----------
KERNEL_SIZE = 15
SIGMA1 = 1.5
SIGMA2 = 3.0
E_PARAM = 1.0
RHO = 0.0
A_PARAM = 1.0
B_PARAM = 3.0

LANE = 128
SUBLANE = 8


def _round_up(x, m):
    return (x + m - 1) // m * m


def make_inhibition_kernel():
    """W2 = A*max(DoG,0) - B*max(-DoG,0)  (fixed surround-inhibition weights)."""
    ks = KERNEL_SIZE
    cen = (ks - 1) / 2.0
    y, x = np.meshgrid(np.arange(ks) - cen, np.arange(ks) - cen, indexing="ij")
    r2 = x * x + y * y
    g1 = np.exp(-r2 / (2.0 * SIGMA1 ** 2)) / (2.0 * np.pi * SIGMA1 ** 2)
    g2 = np.exp(-r2 / (2.0 * SIGMA2 ** 2)) / (2.0 * np.pi * SIGMA2 ** 2)
    dog = g1 - E_PARAM * g2 - RHO
    w2 = A_PARAM * np.maximum(dog, 0.0) - B_PARAM * np.maximum(-dog, 0.0)
    return w2.astype(np.float32)


def _make_paired_toeplitz(w2, W, Wt, G):
    """Constant RHS stack for the MXU formulation of the 15x15 'same' conv.

    Per row-tap i a banded column-Toeplitz with a block per packed image:
        T_i[g*W + x_in, g*W + x_out] = w2[i, x_in - x_out + P]  (inside the band)
    Out-of-range x_in drops out -> implicit zero column padding; the block
    diagonal confines every image to its own lane range (no cross-image bleed).
    Consecutive taps are stacked into (2*Wt, Wt) pairs so each matmul has a
    2*Wt-deep contraction; K odd -> the last pair's second half is all zeros.
    """
    K = w2.shape[0]
    P = (K - 1) // 2
    t = np.zeros((K, Wt, Wt), np.float32)
    xo = np.arange(W)
    for i in range(K):
        for j in range(K):
            xi = xo + j - P
            valid = (xi >= 0) & (xi < W)
            for g in range(G):
                off = g * W
                t[i, off + xi[valid], off + xo[valid]] = w2[i, j]
    if K % 2:
        t = np.concatenate([t, np.zeros((1, Wt, Wt), np.float32)], axis=0)
    npair = t.shape[0] // 2
    return t.reshape(npair, 2 * Wt, Wt)


# --- Pallas kernel ------------------------------------------------------------
def lobula_kernel(t_ref, a_ref, b_ref, c_ref, d_ref, o_ref, comb_scr,
                  *, H, W, G, K, row_off):
    Bg = o_ref.shape[0]                    # packed groups in this batch block
    Hs, Wt = comb_scr.shape[-2], comb_scr.shape[-1]
    P = (K - 1) // 2
    M = Bg * H
    npair = t_ref.shape[0]

    # ---- halo-only zeroing (top/bottom rows); the interior rows (including
    # their lane padding) are fully overwritten below -> no full-scratch memset.
    comb_scr[:, 0:row_off, :] = jnp.zeros((Bg, row_off, Wt), jnp.float32)
    comb_scr[:, row_off + H:Hs, :] = jnp.zeros((Bg, Hs - row_off - H, Wt),
                                               jnp.float32)

    # ---- combine a*d + b*c, lane-pack the G images side by side, and write the
    # interior rows with a single aligned, full-width store.
    comb = a_ref[...] * d_ref[...] + b_ref[...] * c_ref[...]       # (Bg,G,H,W)
    pieces = [comb[:, k] for k in range(G)]
    if G * W < Wt:
        pieces.append(jnp.zeros((Bg, H, Wt - G * W), jnp.float32))
    packed = pieces[0] if len(pieces) == 1 else jnp.concatenate(pieces, axis=-1)
    comb_scr[:, row_off:row_off + H, :] = packed                    # (Bg,H,Wt)

    # ---- 15x15 'same' conv = 8 MXU matmuls over all Bg*H rows at once.
    def tap_rows(i):
        r0 = row_off - P + i
        return comb_scr[:, r0:r0 + H, :].reshape(M, Wt)

    acc = jnp.zeros((M, Wt), jnp.float32)
    for p in range(npair):
        i0 = 2 * p
        i1 = min(2 * p + 1, K - 1)      # phantom tap multiplies an all-zero RHS half
        lhs = jnp.concatenate([tap_rows(i0), tap_rows(i1)], axis=-1)  # (M, 2*Wt)
        acc = acc + jnp.dot(lhs, t_ref[p], preferred_element_type=jnp.float32)

    # ---- ReLU + one lane-dense store for the whole batch block.
    o_ref[...] = jnp.maximum(acc, 0.0).reshape(Bg, H, Wt).astype(o_ref.dtype)


# --- Wrapper ------------------------------------------------------------------
def _chip_profile():
    """(vmem_budget_bytes, min_grid_steps) per TPU generation."""
    kind = ""
    try:
        kind = jax.devices()[0].device_kind.lower()
    except Exception:
        pass
    if "v5" in kind or "v6" in kind:
        # v5e/v6e: one TensorCore per chip, 128 MiB VMEM -> take the biggest
        # per-step block that fits; no reason to force multiple grid steps.
        return 88 << 20, 1
    # v7x (and unknown, conservatively): 64 MiB VMEM per core, 2 cores ->
    # smaller budget, keep >= 2 grid steps so a parallel batch axis can split.
    return 44 << 20, 2


def _pick_group_block(ng, fixed_bytes, per_group_bytes, budget_bytes, min_steps):
    """Largest divisor of ng whose working set fits the budget."""
    best = 1
    for cand in range(1, ng + 1):
        if ng % cand:
            continue
        if min_steps > 1 and ng >= min_steps and ng // cand < min_steps:
            continue
        if fixed_bytes + cand * per_group_bytes <= budget_bytes:
            best = cand
    return best


def lobula_forward(lobula_ipt):
    """lobula_ipt: list of 4 arrays, each [B, 1, H, W] float32 (NCHW, C=1)."""
    a, b, c, d = [x[:, 0, :, :] for x in lobula_ipt]      # (B, H, W)
    B, H, W = a.shape
    K = KERNEL_SIZE
    P = (K - 1) // 2

    Wt = _round_up(W, LANE)                    # lane-dense working width
    row_off = _round_up(P, SUBLANE)            # sublane-aligned interior start
    Hs = _round_up(row_off + H + P, SUBLANE)   # padded scratch height

    # Lane packing: G images share one 128-lane row (W << 128 would otherwise
    # leave most MXU lanes multiplying zeros).  G must divide B.
    g_max = max(1, Wt // W)
    G = 1
    for cand in range(1, min(B, g_max) + 1):
        if B % cand == 0:
            G = cand
    NG = B // G                                # number of packed groups

    w2 = make_inhibition_kernel()
    t_pairs = jnp.asarray(_make_paired_toeplitz(w2, W, Wt, G))   # (npair,2Wt,Wt)
    npair = t_pairs.shape[0]

    itemsize = 4
    const_bytes = 2 * npair * (2 * Wt) * Wt * itemsize   # resident constant (x2 buffers)
    per_group_bytes = (4 * 2 * G * H * W      # four inputs, double buffered
                       + 2 * H * Wt           # packed output, double buffered
                       + Hs * Wt) * itemsize  # combine scratch
    budget, min_steps = _chip_profile()
    Bg = _pick_group_block(NG, const_bytes, per_group_bytes, budget, min_steps)
    grid = (NG // Bg,)
    vmem_limit = int(min(max(const_bytes + Bg * per_group_bytes + (8 << 20),
                             32 << 20),
                         budget + (16 << 20)))

    a4, b4, c4, d4 = (x.reshape(NG, G, H, W) for x in (a, b, c, d))
    img_spec = pl.BlockSpec((Bg, G, H, W), lambda g: (g, 0, 0, 0))

    out_packed = pl.pallas_call(
        functools.partial(lobula_kernel, H=H, W=W, G=G, K=K, row_off=row_off),
        out_shape=jax.ShapeDtypeStruct((NG, H, Wt), a.dtype),
        grid=grid,
        in_specs=[
            # Constant Toeplitz stack: same block every step -> stays resident.
            pl.BlockSpec((npair, 2 * Wt, Wt), lambda g: (0, 0, 0)),
            img_spec, img_spec, img_spec, img_spec,
        ],
        out_specs=pl.BlockSpec((Bg, H, Wt), lambda g: (g, 0, 0)),
        scratch_shapes=[pltpu.VMEM((Bg, Hs, Wt), jnp.float32)],
        compiler_params=pltpu.CompilerParams(
            dimension_semantics=("parallel",),
            vmem_limit_bytes=vmem_limit),
    )(t_pairs, a4, b4, c4, d4)

    # Un-pack the lane-packed, lane-dense kernel output back to (B, 1, H, W).
    out = out_packed[:, :, :G * W].reshape(NG, H, G, W)
    out = jnp.transpose(out, (0, 2, 1, 3)).reshape(B, H, W)
    return out[:, None, :, :]


# --- Pure-JAX reference for validation ----------------------------------------
def lobula_reference(lobula_ipt, w):
    a, b, c, d = lobula_ipt
    comb = a * d + b * c
    conv = jax.lax.conv_general_dilated(
        comb, w[None, None], window_strides=(1, 1), padding="SAME",
        dimension_numbers=("NCHW", "OIHW", "NCHW"),
        precision=jax.lax.Precision.HIGHEST)
    return jnp.maximum(conv, 0.0)


if __name__ == "__main__":
    key = jax.random.PRNGKey(0)
    B, C, H, W = 2, 1, 16, 16   # small NCHW grayscale frames (C=1 as in STMD)
    keys = jax.random.split(key, 4)
    lobula_ipt = [jax.random.uniform(k, (B, C, H, W), dtype=jnp.float32)
                  for k in keys]

    out = jax.block_until_ready(lobula_forward(lobula_ipt))
    ref = jax.block_until_ready(
        lobula_reference(lobula_ipt, jnp.asarray(make_inhibition_kernel())))

    assert out.shape == (B, C, H, W)
    # Tolerance covers the MXU's lowest-precision f32 matmul mode (<~1e-2 abs);
    # structural errors (wrong taps / packing) would be O(0.1).
    np.testing.assert_allclose(np.asarray(out), np.asarray(ref),
                               rtol=1e-2, atol=1e-2)

    print("KERNEL_OK")
</pallas_src>

<mosaic_0001>
module attributes {stable_mosaic.version = 11 : i64} {
  func.func @lobula_kernel(%arg0: i32, %arg1: memref<8x256x128xf32, #tpu.memory_space<vmem>>, %arg2: memref<1x2x16x16xf32, #tpu.memory_space<vmem>>, %arg3: memref<1x2x16x16xf32, #tpu.memory_space<vmem>>, %arg4: memref<1x2x16x16xf32, #tpu.memory_space<vmem>>, %arg5: memref<1x2x16x16xf32, #tpu.memory_space<vmem>>, %arg6: memref<1x16x128xf32, #tpu.memory_space<vmem>>, %arg7: memref<1x32x128xf32, #tpu.memory_space<vmem>>) attributes {dimension_semantics = [#tpu.dimension_semantics<parallel>], iteration_bounds = array<i64: 1>, scalar_prefetch = 0 : i64, scratch_operands = 1 : i64, tpu.core_type = #tpu.core_type<tc>, window_params = [{pipeline_mode = #tpu.pipeline_mode<synchronous>, transform_indices = @transform_0, window_bounds = array<i64: 8, 256, 128>}, {transform_indices = @transform_1, window_bounds = array<i64: 1, 2, 16, 16>}, {transform_indices = @transform_2, window_bounds = array<i64: 1, 2, 16, 16>}, {transform_indices = @transform_3, window_bounds = array<i64: 1, 2, 16, 16>}, {transform_indices = @transform_4, window_bounds = array<i64: 1, 2, 16, 16>}, {transform_indices = @transform_5, window_bounds = array<i64: 1, 16, 128>}]} {
    %cst = arith.constant 0.000000e+00 : f32
    %0 = vector.broadcast %cst : f32 to vector<1x8x128xf32>
    %c0 = arith.constant 0 : index
    %c0_0 = arith.constant 0 : index
    %c0_1 = arith.constant 0 : index
    %1 = vector.load %arg7[%c0, %c0_0, %c0_1] : memref<1x32x128xf32, #tpu.memory_space<vmem>>, vector<1x8x128xf32>
    tpu.vector_store %arg7[%c0, %c0_0, %c0_1], %0 {strides = array<i32>} : memref<1x32x128xf32, #tpu.memory_space<vmem>>, vector<1x8x128xf32>,
    %cst_2 = arith.constant 0.000000e+00 : f32
    %2 = vector.broadcast %cst_2 : f32 to vector<1x8x128xf32>
    %c0_3 = arith.constant 0 : index
    %c24 = arith.constant 24 : index
    %c0_4 = arith.constant 0 : index
    %3 = vector.load %arg7[%c0_3, %c24, %c0_4] : memref<1x32x128xf32, #tpu.memory_space<vmem>>, vector<1x8x128xf32>
    tpu.vector_store %arg7[%c0_3, %c24, %c0_4], %2 {strides = array<i32>} : memref<1x32x128xf32, #tpu.memory_space<vmem>>, vector<1x8x128xf32>,
    %c0_5 = arith.constant 0 : index
    %c0_6 = arith.constant 0 : index
    %c0_7 = arith.constant 0 : index
    %c0_8 = arith.constant 0 : index
    %4 = vector.load %arg2[%c0_5, %c0_6, %c0_7, %c0_8] : memref<1x2x16x16xf32, #tpu.memory_space<vmem>>, vector<1x2x16x16xf32>
    %c0_9 = arith.constant 0 : index
    %c0_10 = arith.constant 0 : index
    %c0_11 = arith.constant 0 : index
    %c0_12 = arith.constant 0 : index
    %5 = vector.load %arg5[%c0_9, %c0_10, %c0_11, %c0_12] : memref<1x2x16x16xf32, #tpu.memory_space<vmem>>, vector<1x2x16x16xf32>
    %6 = arith.mulf %4, %5 : vector<1x2x16x16xf32>
    %c0_13 = arith.constant 0 : index
    %c0_14 = arith.constant 0 : index
    %c0_15 = arith.constant 0 : index
    %c0_16 = arith.constant 0 : index
    %7 = vector.load %arg3[%c0_13, %c0_14, %c0_15, %c0_16] : memref<1x2x16x16xf32, #tpu.memory_space<vmem>>, vector<1x2x16x16xf32>
    %c0_17 = arith.constant 0 : index
    %c0_18 = arith.constant 0 : index
    %c0_19 = arith.constant 0 : index
    %c0_20 = arith.constant 0 : index
    %8 = vector.load %arg4[%c0_17, %c0_18, %c0_19, %c0_20] : memref<1x2x16x16xf32, #tpu.memory_space<vmem>>, vector<1x2x16x16xf32>
    %9 = arith.mulf %7, %8 : vector<1x2x16x16xf32>
    %10 = arith.addf %6, %9 : vector<1x2x16x16xf32>
    %11 = vector.extract_strided_slice %10 {offsets = [0, 0, 0, 0], sizes = [1, 1, 16, 16], strides = [1, 1, 1, 1]} : vector<1x2x16x16xf32> to vector<1x1x16x16xf32>
    %12 = vector.shape_cast %11 : vector<1x1x16x16xf32> to vector<1x16x16xf32>
    %13 = vector.extract_strided_slice %10 {offsets = [0, 1, 0, 0], sizes = [1, 1, 16, 16], strides = [1, 1, 1, 1]} : vector<1x2x16x16xf32> to vector<1x1x16x16xf32>
    %14 = vector.shape_cast %13 : vector<1x1x16x16xf32> to vector<1x16x16xf32>
    %cst_21 = arith.constant 0.000000e+00 : f32
    %15 = vector.broadcast %cst_21 : f32 to vector<1x16x96xf32>
    %16 = tpu.concatenate %12, %14, %15 in 2 : vector<1x16x16xf32>, vector<1x16x16xf32>, vector<1x16x96xf32> -> vector<1x16x128xf32>
    %c0_22 = arith.constant 0 : index
    %c8 = arith.constant 8 : index
    %c0_23 = arith.constant 0 : index
    %17 = vector.load %arg7[%c0_22, %c8, %c0_23] : memref<1x32x128xf32, #tpu.memory_space<vmem>>, vector<1x16x128xf32>
    tpu.vector_store %arg7[%c0_22, %c8, %c0_23], %16 {strides = array<i32>} : memref<1x32x128xf32, #tpu.memory_space<vmem>>, vector<1x16x128xf32>,
    %cst_24 = arith.constant 0.000000e+00 : f32
    %18 = vector.broadcast %cst_24 : f32 to vector<16x128xf32>
    %c0_25 = arith.constant 0 : index
    %c1 = arith.constant 1 : index
    %c0_26 = arith.constant 0 : index
    %19 = vector.load %arg7[%c0_25, %c1, %c0_26] : memref<1x32x128xf32, #tpu.memory_space<vmem>>, vector<1x16x128xf32>
    %20 = vector.shape_cast %19 : vector<1x16x128xf32> to vector<16x128xf32>
    %c0_27 = arith.constant 0 : index
    %c2 = arith.constant 2 : index
    %c0_28 = arith.constant 0 : index
    %21 = vector.load %arg7[%c0_27, %c2, %c0_28] : memref<1x32x128xf32, #tpu.memory_space<vmem>>, vector<1x16x128xf32>
    %22 = vector.shape_cast %21 : vector<1x16x128xf32> to vector<16x128xf32>
    %23 = tpu.concatenate %20, %22 in 1 : vector<16x128xf32>, vector<16x128xf32> -> vector<16x256xf32>
    %c0_29 = arith.constant 0 : index
    %c0_30 = arith.constant 0 : index
    %c0_31 = arith.constant 0 : index
    %24 = vector.load %arg1[%c0_29, %c0_30, %c0_31] : memref<8x256x128xf32, #tpu.memory_space<vmem>>, vector<1x256x128xf32>
    %25 = vector.shape_cast %24 : vector<1x256x128xf32> to vector<256x128xf32>
    %cst_32 = arith.constant dense<0.000000e+00> : vector<16x128xf32>
    %26 = tpu.matmul %23, %25, %cst_32 {dimension_numbers = #tpu.dot_dimension_numbers<[1], [0], [0], [1], [0, 0, 1, 1], [], []>} : vector<16x256xf32>, vector<256x128xf32>, vector<16x128xf32> -> vector<16x128xf32>
    %27 = arith.addf %18, %26 : vector<16x128xf32>
    %c0_33 = arith.constant 0 : index
    %c3 = arith.constant 3 : index
    %c0_34 = arith.constant 0 : index
    %28 = vector.load %arg7[%c0_33, %c3, %c0_34] : memref<1x32x128xf32, #tpu.memory_space<vmem>>, vector<1x16x128xf32>
    %29 = vector.shape_cast %28 : vector<1x16x128xf32> to vector<16x128xf32>
    %c0_35 = arith.constant 0 : index
    %c4 = arith.constant 4 : index
    %c0_36 = arith.constant 0 : index
    %30 = vector.load %arg7[%c0_35, %c4, %c0_36] : memref<1x32x128xf32, #tpu.memory_space<vmem>>, vector<1x16x128xf32>
    %31 = vector.shape_cast %30 : vector<1x16x128xf32> to vector<16x128xf32>
    %32 = tpu.concatenate %29, %31 in 1 : vector<16x128xf32>, vector<16x128xf32> -> vector<16x256xf32>
    %c1_37 = arith.constant 1 : index
    %c0_38 = arith.constant 0 : index
    %c0_39 = arith.constant 0 : index
    %33 = vector.load %arg1[%c1_37, %c0_38, %c0_39] : memref<8x256x128xf32, #tpu.memory_space<vmem>>, vector<1x256x128xf32>
    %34 = vector.shape_cast %33 : vector<1x256x128xf32> to vector<256x128xf32>
    %cst_40 = arith.constant dense<0.000000e+00> : vector<16x128xf32>
    %35 = tpu.matmul %32, %34, %cst_40 {dimension_numbers = #tpu.dot_dimension_numbers<[1], [0], [0], [1], [0, 0, 1, 1], [], []>} : vector<16x256xf32>, vector<256x128xf32>, vector<16x128xf32> -> vector<16x128xf32>
    %36 = arith.addf %27, %35 : vector<16x128xf32>
    %c0_41 = arith.constant 0 : index
    %c5 = arith.constant 5 : index
    %c0_42 = arith.constant 0 : index
    %37 = vector.load %arg7[%c0_41, %c5, %c0_42] : memref<1x32x128xf32, #tpu.memory_space<vmem>>, vector<1x16x128xf32>
    %38 = vector.shape_cast %37 : vector<1x16x128xf32> to vector<16x128xf32>
    %c0_43 = arith.constant 0 : index
    %c6 = arith.constant 6 : index
    %c0_44 = arith.constant 0 : index
    %39 = vector.load %arg7[%c0_43, %c6, %c0_44] : memref<1x32x128xf32, #tpu.memory_space<vmem>>, vector<1x16x128xf32>
    %40 = vector.shape_cast %39 : vector<1x16x128xf32> to vector<16x128xf32>
    %41 = tpu.concatenate %38, %40 in 1 : vector<16x128xf32>, vector<16x128xf32> -> vector<16x256xf32>
    %c2_45 = arith.constant 2 : index
    %c0_46 = arith.constant 0 : index
    %c0_47 = arith.constant 0 : index
    %42 = vector.load %arg1[%c2_45, %c0_46, %c0_47] : memref<8x256x128xf32, #tpu.memory_space<vmem>>, vector<1x256x128xf32>
    %43 = vector.shape_cast %42 : vector<1x256x128xf32> to vector<256x128xf32>
    %cst_48 = arith.constant dense<0.000000e+00> : vector<16x128xf32>
    %44 = tpu.matmul %41, %43, %cst_48 {dimension_numbers = #tpu.dot_dimension_numbers<[1], [0], [0], [1], [0, 0, 1, 1], [], []>} : vector<16x256xf32>, vector<256x128xf32>, vector<16x128xf32> -> vector<16x128xf32>
    %45 = arith.addf %36, %44 : vector<16x128xf32>
    %c0_49 = arith.constant 0 : index
    %c7 = arith.constant 7 : index
    %c0_50 = arith.constant 0 : index
    %46 = vector.load %arg7[%c0_49, %c7, %c0_50] : memref<1x32x128xf32, #tpu.memory_space<vmem>>, vector<1x16x128xf32>
    %47 = vector.shape_cast %46 : vector<1x16x128xf32> to vector<16x128xf32>
    %c0_51 = arith.constant 0 : index
    %c8_52 = arith.constant 8 : index
    %c0_53 = arith.constant 0 : index
    %48 = vector.load %arg7[%c0_51, %c8_52, %c0_53] : memref<1x32x128xf32, #tpu.memory_space<vmem>>, vector<1x16x128xf32>
    %49 = vector.shape_cast %48 : vector<1x16x128xf32> to vector<16x128xf32>
    %50 = tpu.concatenate %47, %49 in 1 : vector<16x128xf32>, vector<16x128xf32> -> vector<16x256xf32>
    %c3_54 = arith.constant 3 : index
    %c0_55 = arith.constant 0 : index
    %c0_56 = arith.constant 0 : index
    %51 = vector.load %arg1[%c3_54, %c0_55, %c0_56] : memref<8x256x128xf32, #tpu.memory_space<vmem>>, vector<1x256x128xf32>
    %52 = vector.shape_cast %51 : vector<1x256x128xf32> to vector<256x128xf32>
    %cst_57 = arith.constant dense<0.000000e+00> : vector<16x128xf32>
    %53 = tpu.matmul %50, %52, %cst_57 {dimension_numbers = #tpu.dot_dimension_numbers<[1], [0], [0], [1], [0, 0, 1, 1], [], []>} : vector<16x256xf32>, vector<256x128xf32>, vector<16x128xf32> -> vector<16x128xf32>
    %54 = arith.addf %45, %53 : vector<16x128xf32>
    %c0_58 = arith.constant 0 : index
    %c9 = arith.constant 9 : index
    %c0_59 = arith.constant 0 : index
    %55 = vector.load %arg7[%c0_58, %c9, %c0_59] : memref<1x32x128xf32, #tpu.memory_space<vmem>>, vector<1x16x128xf32>
    %56 = vector.shape_cast %55 : vector<1x16x128xf32> to vector<16x128xf32>
    %c0_60 = arith.constant 0 : index
    %c10 = arith.constant 10 : index
    %c0_61 = arith.constant 0 : index
    %57 = vector.load %arg7[%c0_60, %c10, %c0_61] : memref<1x32x128xf32, #tpu.memory_space<vmem>>, vector<1x16x128xf32>
    %58 = vector.shape_cast %57 : vector<1x16x128xf32> to vector<16x128xf32>
    %59 = tpu.concatenate %56, %58 in 1 : vector<16x128xf32>, vector<16x128xf32> -> vector<16x256xf32>
    %c4_62 = arith.constant 4 : index
    %c0_63 = arith.constant 0 : index
    %c0_64 = arith.constant 0 : index
    %60 = vector.load %arg1[%c4_62, %c0_63, %c0_64] : memref<8x256x128xf32, #tpu.memory_space<vmem>>, vector<1x256x128xf32>
    %61 = vector.shape_cast %60 : vector<1x256x128xf32> to vector<256x128xf32>
    %cst_65 = arith.constant dense<0.000000e+00> : vector<16x128xf32>
    %62 = tpu.matmul %59, %61, %cst_65 {dimension_numbers = #tpu.dot_dimension_numbers<[1], [0], [0], [1], [0, 0, 1, 1], [], []>} : vector<16x256xf32>, vector<256x128xf32>, vector<16x128xf32> -> vector<16x128xf32>
    %63 = arith.addf %54, %62 : vector<16x128xf32>
    %c0_66 = arith.constant 0 : index
    %c11 = arith.constant 11 : index
    %c0_67 = arith.constant 0 : index
    %64 = vector.load %arg7[%c0_66, %c11, %c0_67] : memref<1x32x128xf32, #tpu.memory_space<vmem>>, vector<1x16x128xf32>
    %65 = vector.shape_cast %64 : vector<1x16x128xf32> to vector<16x128xf32>
    %c0_68 = arith.constant 0 : index
    %c12 = arith.constant 12 : index
    %c0_69 = arith.constant 0 : index
    %66 = vector.load %arg7[%c0_68, %c12, %c0_69] : memref<1x32x128xf32, #tpu.memory_space<vmem>>, vector<1x16x128xf32>
    %67 = vector.shape_cast %66 : vector<1x16x128xf32> to vector<16x128xf32>
    %68 = tpu.concatenate %65, %67 in 1 : vector<16x128xf32>, vector<16x128xf32> -> vector<16x256xf32>
    %c5_70 = arith.constant 5 : index
    %c0_71 = arith.constant 0 : index
    %c0_72 = arith.constant 0 : index
    %69 = vector.load %arg1[%c5_70, %c0_71, %c0_72] : memref<8x256x128xf32, #tpu.memory_space<vmem>>, vector<1x256x128xf32>
    %70 = vector.shape_cast %69 : vector<1x256x128xf32> to vector<256x128xf32>
    %cst_73 = arith.constant dense<0.000000e+00> : vector<16x128xf32>
    %71 = tpu.matmul %68, %70, %cst_73 {dimension_numbers = #tpu.dot_dimension_numbers<[1], [0], [0], [1], [0, 0, 1, 1], [], []>} : vector<16x256xf32>, vector<256x128xf32>, vector<16x128xf32> -> vector<16x128xf32>
    %72 = arith.addf %63, %71 : vector<16x128xf32>
    %c0_74 = arith.constant 0 : index
    %c13 = arith.constant 13 : index
    %c0_75 = arith.constant 0 : index
    %73 = vector.load %arg7[%c0_74, %c13, %c0_75] : memref<1x32x128xf32, #tpu.memory_space<vmem>>, vector<1x16x128xf32>
    %74 = vector.shape_cast %73 : vector<1x16x128xf32> to vector<16x128xf32>
    %c0_76 = arith.constant 0 : index
    %c14 = arith.constant 14 : index
    %c0_77 = arith.constant 0 : index
    %75 = vector.load %arg7[%c0_76, %c14, %c0_77] : memref<1x32x128xf32, #tpu.memory_space<vmem>>, vector<1x16x128xf32>
    %76 = vector.shape_cast %75 : vector<1x16x128xf32> to vector<16x128xf32>
    %77 = tpu.concatenate %74, %76 in 1 : vector<16x128xf32>, vector<16x128xf32> -> vector<16x256xf32>
    %c6_78 = arith.constant 6 : index
    %c0_79 = arith.constant 0 : index
    %c0_80 = arith.constant 0 : index
    %78 = vector.load %arg1[%c6_78, %c0_79, %c0_80] : memref<8x256x128xf32, #tpu.memory_space<vmem>>, vector<1x256x128xf32>
    %79 = vector.shape_cast %78 : vector<1x256x128xf32> to vector<256x128xf32>
    %cst_81 = arith.constant dense<0.000000e+00> : vector<16x128xf32>
    %80 = tpu.matmul %77, %79, %cst_81 {dimension_numbers = #tpu.dot_dimension_numbers<[1], [0], [0], [1], [0, 0, 1, 1], [], []>} : vector<16x256xf32>, vector<256x128xf32>, vector<16x128xf32> -> vector<16x128xf32>
    %81 = arith.addf %72, %80 : vector<16x128xf32>
    %c0_82 = arith.constant 0 : index
    %c15 = arith.constant 15 : index
    %c0_83 = arith.constant 0 : index
    %82 = vector.load %arg7[%c0_82, %c15, %c0_83] : memref<1x32x128xf32, #tpu.memory_space<vmem>>, vector<1x16x128xf32>
    %83 = vector.shape_cast %82 : vector<1x16x128xf32> to vector<16x128xf32>
    %c0_84 = arith.constant 0 : index
    %c15_85 = arith.constant 15 : index
    %c0_86 = arith.constant 0 : index
    %84 = vector.load %arg7[%c0_84, %c15_85, %c0_86] : memref<1x32x128xf32, #tpu.memory_space<vmem>>, vector<1x16x128xf32>
    %85 = vector.shape_cast %84 : vector<1x16x128xf32> to vector<16x128xf32>
    %86 = tpu.concatenate %83, %85 in 1 : vector<16x128xf32>, vector<16x128xf32> -> vector<16x256xf32>
    %c7_87 = arith.constant 7 : index
    %c0_88 = arith.constant 0 : index
    %c0_89 = arith.constant 0 : index
    %87 = vector.load %arg1[%c7_87, %c0_88, %c0_89] : memref<8x256x128xf32, #tpu.memory_space<vmem>>, vector<1x256x128xf32>
    %88 = vector.shape_cast %87 : vector<1x256x128xf32> to vector<256x128xf32>
    %cst_90 = arith.constant dense<0.000000e+00> : vector<16x128xf32>
    %89 = tpu.matmul %86, %88, %cst_90 {dimension_numbers = #tpu.dot_dimension_numbers<[1], [0], [0], [1], [0, 0, 1, 1], [], []>} : vector<16x256xf32>, vector<256x128xf32>, vector<16x128xf32> -> vector<16x128xf32>
    %90 = arith.addf %81, %89 : vector<16x128xf32>
    %cst_91 = arith.constant 0.000000e+00 : f32
    %91 = vector.broadcast %cst_91 : f32 to vector<16x128xf32>
    %92 = arith.maximumf %90, %91 : vector<16x128xf32>
    %93 = vector.shape_cast %92 : vector<16x128xf32> to vector<1x16x128xf32>
    %c0_92 = arith.constant 0 : index
    %c0_93 = arith.constant 0 : index
    %c0_94 = arith.constant 0 : index
    %94 = vector.load %arg6[%c0_92, %c0_93, %c0_94] : memref<1x16x128xf32, #tpu.memory_space<vmem>>, vector<1x16x128xf32>
    tpu.vector_store %arg6[%c0_92, %c0_93, %c0_94], %93 {strides = array<i32>} : memref<1x16x128xf32, #tpu.memory_space<vmem>>, vector<1x16x128xf32>,
    return
  }
  func.func @transform_0(%arg0: i32) -> (i32, i32, i32) {
    %c0_i32 = arith.constant 0 : i32
    %c0_i32_0 = arith.constant 0 : i32
    %c0_i32_1 = arith.constant 0 : i32
    %c0_i32_2 = arith.constant 0 : i32
    return %c0_i32, %c0_i32_0, %c0_i32_1 : i32, i32, i32
  }
  func.func @transform_1(%arg0: i32) -> (i32, i32, i32, i32) {
    %c0_i32 = arith.constant 0 : i32
    %c0_i32_0 = arith.constant 0 : i32
    %c0_i32_1 = arith.constant 0 : i32
    %c0_i32_2 = arith.constant 0 : i32
    return %arg0, %c0_i32, %c0_i32_0, %c0_i32_1 : i32, i32, i32, i32
  }
  func.func @transform_2(%arg0: i32) -> (i32, i32, i32, i32) {
    %c0_i32 = arith.constant 0 : i32
    %c0_i32_0 = arith.constant 0 : i32
    %c0_i32_1 = arith.constant 0 : i32
    %c0_i32_2 = arith.constant 0 : i32
    return %arg0, %c0_i32, %c0_i32_0, %c0_i32_1 : i32, i32, i32, i32
  }
  func.func @transform_3(%arg0: i32) -> (i32, i32, i32, i32) {
    %c0_i32 = arith.constant 0 : i32
    %c0_i32_0 = arith.constant 0 : i32
    %c0_i32_1 = arith.constant 0 : i32
    %c0_i32_2 = arith.constant 0 : i32
    return %arg0, %c0_i32, %c0_i32_0, %c0_i32_1 : i32, i32, i32, i32
  }
  func.func @transform_4(%arg0: i32) -> (i32, i32, i32, i32) {
    %c0_i32 = arith.constant 0 : i32
    %c0_i32_0 = arith.constant 0 : i32
    %c0_i32_1 = arith.constant 0 : i32
    %c0_i32_2 = arith.constant 0 : i32
    return %arg0, %c0_i32, %c0_i32_0, %c0_i32_1 : i32, i32, i32, i32
  }
  func.func @transform_5(%arg0: i32) -> (i32, i32, i32) {
    %c0_i32 = arith.constant 0 : i32
    %c0_i32_0 = arith.constant 0 : i32
    %c0_i32_1 = arith.constant 0 : i32
    return %arg0, %c0_i32, %c0_i32_0 : i32, i32, i32
  }
}

</mosaic_0001>

<llo_original>
// kernel: tpu_custom_call.1
$region0: #{tpu_custom_call.1}
  #allocation0 [shape = 'u32[]', space=smem, size = 0x4, offset = 0x4, fixed_abs, tag = 'smem constant byte address 0x4 - core index']
  #allocation1 [shape = 'u32[144,128]{1,0:T(1,128)}', space=vmem, size = 0x12000, scoped, tag = 'internal scratch']
  #allocation2 [shape = 'f32[1,32,128]{2,1,0:T(8,128)}', space=vmem, size = 0x4000, scoped, tag = 'scratch operand']
  %s0 = inlined_call_operand.hbm [shape: f32[8,256,128], index: 0, kind: input, shape index: {}]
  %s1 = inlined_call_operand.hbm [shape: f32[1,2,16,16], index: 1, kind: input, shape index: {}]
  %s2 = inlined_call_operand.hbm [shape: f32[1,2,16,16], index: 2, kind: input, shape index: {}]
  %s3 = inlined_call_operand.hbm [shape: f32[1,2,16,16], index: 3, kind: input, shape index: {}]
  %s4 = inlined_call_operand.hbm [shape: f32[1,2,16,16], index: 4, kind: input, shape index: {}]
  %s5 = inlined_call_operand.hbm [shape: f32[1,16,128], index: 5, kind: output, shape index: {}]
  %s6 = sld [smem:[#allocation0]]
  $region50: #{tpu_custom_call.1} parent=0
    _
  %s8 = ssub.s32 1, %s6
  %s9 = scalar_select 0, %s8, %s6
  $region1: #{tpu_custom_call.1} parent=0
    #allocation3 [shape = 'u8[1048576]{0}', space=vmem, size = 0x100000, scoped, tag = 'input window, operand 0, single buffered']
    #allocation4 [shape = 's32[1]{0}', space=sflag, size = 0x4, scoped, tag = 'scoped memory for tpu_custom_call.1']
    #allocation5 [shape = 's32[1]{0}', space=sflag, size = 0x4, scoped, tag = 'scoped memory for tpu_custom_call.1']
    #allocation6 [shape = 'u8[16384]{0}', space=vmem, size = 0x4000, scoped, tag = 'input window, operand 1, single buffered']
    #allocation7 [shape = 's32[1]{0}', space=sflag, size = 0x4, scoped, tag = 'scoped memory for tpu_custom_call.1']
    #allocation8 [shape = 'u8[16384]{0}', space=vmem, size = 0x4000, scoped, tag = 'input window, operand 2, single buffered']
    #allocation9 [shape = 'u8[16384]{0}', space=vmem, size = 0x4000, scoped, tag = 'input window, operand 3, single buffered']
    #allocation10 [shape = 's32[1]{0}', space=sflag, size = 0x4, scoped, tag = 'scoped memory for tpu_custom_call.1']
    #allocation11 [shape = 'u8[16384]{0}', space=vmem, size = 0x4000, scoped, tag = 'input window, operand 4, single buffered']
    #allocation12 [shape = 'u8[8192]{0}', space=vmem, size = 0x2000, scoped, tag = 'output window, operand 0, single buffered']
    %10 = vsyncpa [#allocation4], 0
    %11 = vsyncpa [#allocation7], 0
    %12 = vsyncpa [#allocation10], 0
    %13 = vsyncpa [#allocation5], 0
    // Predicated region
    $region2: #{tpu_custom_call.1} parent=1 // pred_check
      _
    $region3: #{tpu_custom_call.1} parent=1 // pred_check_branch
      %15 = sbr.rel (0) target = $region5
    $region4: #{tpu_custom_call.1} parent=1 // pred_region
      %s17 = ssub.s32 32768, 32768
      %18 = vsyncadd [#allocation4], %s17
      %s19 = sshll.u32 [#allocation3], 4
      %s20 = int_to_ptr.vmem [resolvable:$true] %s19
      %25 = dma.hbm_to_vmem [thread:$0]  %s0, 32768, %s20, [#allocation4], 128, 128, 8
    $region5: #{tpu_custom_call.1} parent=1 // pred_fallthru
      _
    // Predicated region
    $region6: #{tpu_custom_call.1} parent=1 // pred_check
      _
    $region7: #{tpu_custom_call.1} parent=1 // pred_check_branch
      %27 = sbr.rel (0) target = $region9
    $region8: #{tpu_custom_call.1} parent=1 // pred_region
      %s29 = ssub.s32 512, 512
      %30 = vsyncadd [#allocation7], %s29
      %s31 = sshll.u32 [#allocation6], 4
      %s32 = int_to_ptr.vmem [resolvable:$true] %s31
      %37 = dma.hbm_to_vmem [thread:$0]  %s1, 512, %s32, [#allocation7], 128, 128, 8
    $region9: #{tpu_custom_call.1} parent=1 // pred_fallthru
      _
    // Predicated region
    $region10: #{tpu_custom_call.1} parent=1 // pred_check
      _
    $region11: #{tpu_custom_call.1} parent=1 // pred_check_branch
      %39 = sbr.rel (0) target = $region13
    $region12: #{tpu_custom_call.1} parent=1 // pred_region
      %s41 = ssub.s32 512, 512
      %42 = vsyncadd [#allocation7], %s41
      %s43 = sshll.u32 [#allocation8], 4
      %s44 = int_to_ptr.vmem [resolvable:$true] %s43
      %49 = dma.hbm_to_vmem [thread:$0]  %s2, 512, %s44, [#allocation7], 128, 128, 8
    $region13: #{tpu_custom_call.1} parent=1 // pred_fallthru
      _
    // Predicated region
    $region14: #{tpu_custom_call.1} parent=1 // pred_check
      _
    $region15: #{tpu_custom_call.1} parent=1 // pred_check_branch
      %51 = sbr.rel (0) target = $region17
    $region16: #{tpu_custom_call.1} parent=1 // pred_region
      %s53 = ssub.s32 512, 512
      %54 = vsyncadd [#allocation10], %s53
      %s55 = sshll.u32 [#allocation9], 4
      %s56 = int_to_ptr.vmem [resolvable:$true] %s55
      %61 = dma.hbm_to_vmem [thread:$0]  %s3, 512, %s56, [#allocation10], 128, 128, 8
    $region17: #{tpu_custom_call.1} parent=1 // pred_fallthru
      _
    // Predicated region
    $region18: #{tpu_custom_call.1} parent=1 // pred_check
      _
    $region19: #{tpu_custom_call.1} parent=1 // pred_check_branch
      %63 = sbr.rel (0) target = $region21
    $region20: #{tpu_custom_call.1} parent=1 // pred_region
      %s65 = ssub.s32 512, 512
      %66 = vsyncadd [#allocation10], %s65
      %s67 = sshll.u32 [#allocation11], 4
      %s68 = int_to_ptr.vmem [resolvable:$true] %s67
      %73 = dma.hbm_to_vmem [thread:$0]  %s4, 512, %s68, [#allocation10], 128, 128, 8
    $region21: #{tpu_custom_call.1} parent=1 // pred_fallthru
      _
    // Predicated region
    $region22: #{tpu_custom_call.1} parent=1 // pred_check
      _
    $region23: #{tpu_custom_call.1} parent=1 // pred_check_branch
      %75 = sbr.rel (0) target = $region25
    $region24: #{tpu_custom_call.1} parent=1 // pred_region
      %76 = dma.done [#allocation4], 32768
    $region25: #{tpu_custom_call.1} parent=1 // pred_fallthru
      _
    // Predicated region
    $region26: #{tpu_custom_call.1} parent=1 // pred_check
      _
    $region27: #{tpu_custom_call.1} parent=1 // pred_check_branch
      %78 = sbr.rel (0) target = $region29
    $region28: #{tpu_custom_call.1} parent=1 // pred_region
      %79 = dma.done [#allocation7], 512
    $region29: #{tpu_custom_call.1} parent=1 // pred_fallthru
      _
    // Predicated region
    $region30: #{tpu_custom_call.1} parent=1 // pred_check
      _
    $region31: #{tpu_custom_call.1} parent=1 // pred_check_branch
      %81 = sbr.rel (0) target = $region33
    $region32: #{tpu_custom_call.1} parent=1 // pred_region
      %82 = dma.done [#allocation7], 512
    $region33: #{tpu_custom_call.1} parent=1 // pred_fallthru
      _
    // Predicated region
    $region34: #{tpu_custom_call.1} parent=1 // pred_check
      _
    $region35: #{tpu_custom_call.1} parent=1 // pred_check_branch
      %84 = sbr.rel (0) target = $region37
    $region36: #{tpu_custom_call.1} parent=1 // pred_region
      %85 = dma.done [#allocation10], 512
    $region37: #{tpu_custom_call.1} parent=1 // pred_fallthru
      _
    // Predicated region
    $region38: #{tpu_custom_call.1} parent=1 // pred_check
      _
    $region39: #{tpu_custom_call.1} parent=1 // pred_check_branch
      %87 = sbr.rel (0) target = $region41
    $region40: #{tpu_custom_call.1} parent=1 // pred_region
      %88 = dma.done [#allocation10], 512
    $region41: #{tpu_custom_call.1} parent=1 // pred_fallthru
      _
    %89 = vst [vmem:[#allocation2] sm:$0xff] 0.0
    %90 = vst [vmem:[#allocation2 + $0x18] sm:$0xff] 0.0
    %v91 = vld [vmem:[#allocation6] sm:$0xff]
    %v92 = vld [vmem:[#allocation6 + $0x8] sm:$0xff]
    %v93 = vld [vmem:[#allocation6 + $0x10] sm:$0xff]
    %v94 = vld [vmem:[#allocation6 + $0x18] sm:$0xff]
    %v95 = vld [vmem:[#allocation11] sm:$0xff]
    %v96 = vld [vmem:[#allocation11 + $0x8] sm:$0xff]
    %v97 = vld [vmem:[#allocation11 + $0x10] sm:$0xff]
    %v98 = vld [vmem:[#allocation11 + $0x18] sm:$0xff]
    %v99 = vmul.f32 %v91, %v95
    %v100 = vmul.f32 %v92, %v96
    %v101 = vmul.f32 %v93, %v97
    %v102 = vmul.f32 %v94, %v98
    %v103 = vld [vmem:[#allocation8] sm:$0xff]
    %v104 = vld [vmem:[#allocation8 + $0x8] sm:$0xff]
    %v105 = vld [vmem:[#allocation8 + $0x10] sm:$0xff]
    %v106 = vld [vmem:[#allocation8 + $0x18] sm:$0xff]
    %v107 = vld [vmem:[#allocation9] sm:$0xff]
    %v108 = vld [vmem:[#allocation9 + $0x8] sm:$0xff]
    %v109 = vld [vmem:[#allocation9 + $0x10] sm:$0xff]
    %v110 = vld [vmem:[#allocation9 + $0x18] sm:$0xff]
    %v111 = vmul.f32 %v103, %v107
    %v112 = vmul.f32 %v104, %v108
    %v113 = vmul.f32 %v105, %v109
    %v114 = vmul.f32 %v106, %v110
    %v115 = vadd.f32 %v99, %v111
    %v116 = vadd.f32 %v100, %v112
    %v117 = vadd.f32 %v101, %v113
    %v118 = vadd.f32 %v102, %v114
    %121 = vrot.lane.b32.xlu0 %v117, 16
    %v122 = vpop.permute.xlu0 %121
    %123 = vrot.lane.b32.xlu0 %v118, 16
    %v124 = vpop.permute.xlu0 %123
    %vm127 = vcmask 130048
    %v128 = vsel %vm127, %v115, %v122
    %v129 = vsel %vm127, %v116, %v124
    %vm130 = vcmask 261120
    %v131 = vsel %vm130, %v128, 0.0
    %v132 = vsel %vm130, %v129, 0.0
    %133 = vst [vmem:[#allocation2 + $0x8] sm:$0xff] %v131
    %134 = vst [vmem:[#allocation2 + $0x10] sm:$0xff] %v132
    %v135 = vld [vmem:[#allocation2 + $0x1] sm:$0xff]
    %v136 = vld [vmem:[#allocation2 + $0x9] sm:$0xff]
    %v137 = vld [vmem:[#allocation2 + $0x2] sm:$0xff]
    %v138 = vld [vmem:[#allocation2 + $0xa] sm:$0xff]
    %v139 = vld [vmem:[#allocation3] sm:$0xff]
    %v140 = vld [vmem:[#allocation3 + $0x8] sm:$0xff]
    %v141 = vld [vmem:[#allocation3 + $0x10] sm:$0xff]
    %v142 = vld [vmem:[#allocation3 + $0x18] sm:$0xff]
    %v143 = vld [vmem:[#allocation3 + $0x20] sm:$0xff]
    %v144 = vld [vmem:[#allocation3 + $0x28] sm:$0xff]
    %v145 = vld [vmem:[#allocation3 + $0x30] sm:$0xff]
    %v146 = vld [vmem:[#allocation3 + $0x38] sm:$0xff]
    %v147 = vld [vmem:[#allocation3 + $0x40] sm:$0xff]
    %v148 = vld [vmem:[#allocation3 + $0x48] sm:$0xff]
    %v149 = vld [vmem:[#allocation3 + $0x50] sm:$0xff]
    %v150 = vld [vmem:[#allocation3 + $0x58] sm:$0xff]
    %v151 = vld [vmem:[#allocation3 + $0x60] sm:$0xff]
    %v152 = vld [vmem:[#allocation3 + $0x68] sm:$0xff]
    %v153 = vld [vmem:[#allocation3 + $0x70] sm:$0xff]
    %v154 = vld [vmem:[#allocation3 + $0x78] sm:$0xff]
    %v155 = vld [vmem:[#allocation3 + $0x80] sm:$0xff]
    %v156 = vld [vmem:[#allocation3 + $0x88] sm:$0xff]
    %v157 = vld [vmem:[#allocation3 + $0x90] sm:$0xff]
    %v158 = vld [vmem:[#allocation3 + $0x98] sm:$0xff]
    %v159 = vld [vmem:[#allocation3 + $0xa0] sm:$0xff]
    %v160 = vld [vmem:[#allocation3 + $0xa8] sm:$0xff]
    %v161 = vld [vmem:[#allocation3 + $0xb0] sm:$0xff]
    %v162 = vld [vmem:[#allocation3 + $0xb8] sm:$0xff]
    %v163 = vld [vmem:[#allocation3 + $0xc0] sm:$0xff]
    %v164 = vld [vmem:[#allocation3 + $0xc8] sm:$0xff]
    %v165 = vld [vmem:[#allocation3 + $0xd0] sm:$0xff]
    %v166 = vld [vmem:[#allocation3 + $0xd8] sm:$0xff]
    %v167 = vld [vmem:[#allocation3 + $0xe0] sm:$0xff]
    %v168 = vld [vmem:[#allocation3 + $0xe8] sm:$0xff]
    %v169 = vld [vmem:[#allocation3 + $0xf0] sm:$0xff]
    %v170 = vld [vmem:[#allocation3 + $0xf8] sm:$0xff]
    %v171 = vld [vmem:[#allocation2 + $0x3] sm:$0xff]
    %v172 = vld [vmem:[#allocation2 + $0xb] sm:$0xff]
    %v173 = vld [vmem:[#allocation2 + $0x4] sm:$0xff]
    %v174 = vld [vmem:[#allocation2 + $0xc] sm:$0xff]
    %s175 = scalar_lea.vmem [#allocation3], 256
    %v176 = vld [vmem:[%s175] sm:$0xff]
    %v177 = vld [vmem:[%s175 + $0x8] sm:$0xff]
    %v178 = vld [vmem:[%s175 + $0x10] sm:$0xff]
    %v179 = vld [vmem:[%s175 + $0x18] sm:$0xff]
    %v180 = vld [vmem:[%s175 + $0x20] sm:$0xff]
    %v181 = vld [vmem:[%s175 + $0x28] sm:$0xff]
    %v182 = vld [vmem:[%s175 + $0x30] sm:$0xff]
    %v183 = vld [vmem:[%s175 + $0x38] sm:$0xff]
    %v184 = vld [vmem:[%s175 + $0x40] sm:$0xff]
    %v185 = vld [vmem:[%s175 + $0x48] sm:$0xff]
    %v186 = vld [vmem:[%s175 + $0x50] sm:$0xff]
    %v187 = vld [vmem:[%s175 + $0x58] sm:$0xff]
    %v188 = vld [vmem:[%s175 + $0x60] sm:$0xff]
    %v189 = vld [vmem:[%s175 + $0x68] sm:$0xff]
    %v190 = vld [vmem:[%s175 + $0x70] sm:$0xff]
    %v191 = vld [vmem:[%s175 + $0x78] sm:$0xff]
    %v192 = vld [vmem:[%s175 + $0x80] sm:$0xff]
    %v193 = vld [vmem:[%s175 + $0x88] sm:$0xff]
    %v194 = vld [vmem:[%s175 + $0x90] sm:$0xff]
    %v195 = vld [vmem:[%s175 + $0x98] sm:$0xff]
    %v196 = vld [vmem:[%s175 + $0xa0] sm:$0xff]
    %v197 = vld [vmem:[%s175 + $0xa8] sm:$0xff]
    %v198 = vld [vmem:[%s175 + $0xb0] sm:$0xff]
    %v199 = vld [vmem:[%s175 + $0xb8] sm:$0xff]
    %v200 = vld [vmem:[%s175 + $0xc0] sm:$0xff]
    %v201 = vld [vmem:[%s175 + $0xc8] sm:$0xff]
    %v202 = vld [vmem:[%s175 + $0xd0] sm:$0xff]
    %v203 = vld [vmem:[%s175 + $0xd8] sm:$0xff]
    %v204 = vld [vmem:[%s175 + $0xe0] sm:$0xff]
    %v205 = vld [vmem:[%s175 + $0xe8] sm:$0xff]
    %v206 = vld [vmem:[%s175 + $0xf0] sm:$0xff]
    %v207 = vld [vmem:[%s175 + $0xf8] sm:$0xff]
    %208 = vmatprep.subr.mxu0 0.0
    %209 = vmatpush1.msra.mxu0 %v191
    %210 = vmatprep.subr.mxu0 0.0
    %211 = vmatpush1.msra.mxu0 %v190
    %212 = vmatprep.subr.mxu0 0.0
    %213 = vmatpush1.msra.mxu0 %v189
    %214 = vmatprep.subr.mxu0 0.0
    %215 = vmatpush1.msra.mxu0 %v188
    %216 = vmatprep.subr.mxu0 0.0
    %217 = vmatpush1.msra.mxu0 %v187
    %218 = vmatprep.subr.mxu0 0.0
    %219 = vmatpush1.msra.mxu0 %v186
    %220 = vmatprep.subr.mxu0 0.0
    %221 = vmatpush1.msra.mxu0 %v185
    %222 = vmatprep.subr.mxu0 0.0
    %223 = vmatpush1.msra.mxu0 %v184
    %224 = vmatprep.subr.mxu0 0.0
    %225 = vmatpush1.msra.mxu0 %v183
    %226 = vmatprep.subr.mxu0 0.0
    %227 = vmatpush1.msra.mxu0 %v182
    %228 = vmatprep.subr.mxu0 0.0
    %229 = vmatpush1.msra.mxu0 %v181
    %230 = vmatprep.subr.mxu0 0.0
    %231 = vmatpush1.msra.mxu0 %v180
    %232 = vmatprep.subr.mxu0 0.0
    %233 = vmatpush1.msra.mxu0 %v179
    %234 = vmatprep.subr.mxu0 0.0
    %235 = vmatpush1.msra.mxu0 %v178
    %236 = vmatprep.subr.mxu0 0.0
    %237 = vmatpush1.msra.mxu0 %v177
    %238 = vmatprep.subr.mxu0 0.0
    %239 = vmatpush1.msra.mxu0 %v176
    %240 = vmatprep.subr.mxu0 0.0
    %241 = vmatpush2.msra.mxu0 %v207
    %242 = vmatprep.subr.mxu0 0.0
    %243 = vmatpush2.msra.mxu0 %v206
    %244 = vmatprep.subr.mxu0 0.0
    %245 = vmatpush2.msra.mxu0 %v205
    %246 = vmatprep.subr.mxu0 0.0
    %247 = vmatpush2.msra.mxu0 %v204
    %248 = vmatprep.subr.mxu0 0.0
    %249 = vmatpush2.msra.mxu0 %v203
    %250 = vmatprep.subr.mxu0 0.0
    %251 = vmatpush2.msra.mxu0 %v202
    %252 = vmatprep.subr.mxu0 0.0
    %253 = vmatpush2.msra.mxu0 %v201
    %254 = vmatprep.subr.mxu0 0.0
    %255 = vmatpush2.msra.mxu0 %v200
    %256 = vmatprep.subr.mxu0 0.0
    %257 = vmatpush2.msra.mxu0 %v199
    %258 = vmatprep.subr.mxu0 0.0
    %259 = vmatpush2.msra.mxu0 %v198
    %260 = vmatprep.subr.mxu0 0.0
    %261 = vmatpush2.msra.mxu0 %v197
    %262 = vmatprep.subr.mxu0 0.0
    %263 = vmatpush2.msra.mxu0 %v196
    %264 = vmatprep.subr.mxu0 0.0
    %265 = vmatpush2.msra.mxu0 %v195
    %266 = vmatprep.subr.mxu0 0.0
    %267 = vmatpush2.msra.mxu0 %v194
    %268 = vmatprep.subr.mxu0 0.0
    %269 = vmatpush2.msra.mxu0 %v193
    %270 = vmatprep.subr.mxu0 0.0
    %271 = vmatpush2.msra.mxu0 %v192
    %272 = vmatprep.mubr.f32.mxu0 %v173
    %273 = vmatmul.mubr.f32.gmra.mxu0 %v171
    %v274 = vpop.f32.mrf.mxu0
    %v275 = vadd.f32 0.0, %v274
    %v276 = vpop.f32.mrf.mxu0
    %277 = vmatprep.mubr.f32.mxu0 %v174
    %278 = vmatmul.mubr.f32.gmra.mxu0 %v172
    %v279 = vpop.f32.mrf.mxu0
    %v280 = vadd.f32 0.0, %v279
    %v281 = vpop.f32.mrf.mxu0
    %282 = vdwg.mxu0
    %283 = vmatprep.subr.mxu0 0.0
    %284 = vmatpush1.msra.mxu0 %v154
    %285 = vmatprep.subr.mxu0 0.0
    %286 = vmatpush1.msra.mxu0 %v153
    %287 = vmatprep.subr.mxu0 0.0
    %288 = vmatpush1.msra.mxu0 %v152
    %289 = vmatprep.subr.mxu0 0.0
    %290 = vmatpush1.msra.mxu0 %v151
    %291 = vmatprep.subr.mxu0 0.0
    %292 = vmatpush1.msra.mxu0 %v150
    %293 = vmatprep.subr.mxu0 0.0
    %294 = vmatpush1.msra.mxu0 %v149
    %295 = vmatprep.subr.mxu0 0.0
    %296 = vmatpush1.msra.mxu0 %v148
    %297 = vmatprep.subr.mxu0 0.0
    %298 = vmatpush1.msra.mxu0 %v147
    %299 = vmatprep.subr.mxu0 0.0
    %300 = vmatpush1.msra.mxu0 %v146
    %301 = vmatprep.subr.mxu0 0.0
    %302 = vmatpush1.msra.mxu0 %v145
    %303 = vmatprep.subr.mxu0 0.0
    %304 = vmatpush1.msra.mxu0 %v144
    %305 = vmatprep.subr.mxu0 0.0
    %306 = vmatpush1.msra.mxu0 %v143
    %307 = vmatprep.subr.mxu0 0.0
    %308 = vmatpush1.msra.mxu0 %v142
    %309 = vmatprep.subr.mxu0 0.0
    %310 = vmatpush1.msra.mxu0 %v141
    %311 = vmatprep.subr.mxu0 0.0
    %312 = vmatpush1.msra.mxu0 %v140
    %313 = vmatprep.subr.mxu0 0.0
    %314 = vmatpush1.msra.mxu0 %v139
    %315 = vmatprep.subr.mxu0 0.0
    %316 = vmatpush2.msra.mxu0 %v170
    %317 = vmatprep.subr.mxu0 0.0
    %318 = vmatpush2.msra.mxu0 %v169
    %319 = vmatprep.subr.mxu0 0.0
    %320 = vmatpush2.msra.mxu0 %v168
    %321 = vmatprep.subr.mxu0 0.0
    %322 = vmatpush2.msra.mxu0 %v167
    %323 = vmatprep.subr.mxu0 0.0
    %324 = vmatpush2.msra.mxu0 %v166
    %325 = vmatprep.subr.mxu0 0.0
    %326 = vmatpush2.msra.mxu0 %v165
    %327 = vmatprep.subr.mxu0 0.0
    %328 = vmatpush2.msra.mxu0 %v164
    %329 = vmatprep.subr.mxu0 0.0
    %330 = vmatpush2.msra.mxu0 %v163
    %331 = vmatprep.subr.mxu0 0.0
    %332 = vmatpush2.msra.mxu0 %v162
    %333 = vmatprep.subr.mxu0 0.0
    %334 = vmatpush2.msra.mxu0 %v161
    %335 = vmatprep.subr.mxu0 0.0
    %336 = vmatpush2.msra.mxu0 %v160
    %337 = vmatprep.subr.mxu0 0.0
    %338 = vmatpush2.msra.mxu0 %v159
    %339 = vmatprep.subr.mxu0 0.0
    %340 = vmatpush2.msra.mxu0 %v158
    %341 = vmatprep.subr.mxu0 0.0
    %342 = vmatpush2.msra.mxu0 %v157
    %343 = vmatprep.subr.mxu0 0.0
    %344 = vmatpush2.msra.mxu0 %v156
    %345 = vmatprep.subr.mxu0 0.0
    %346 = vmatpush2.msra.mxu0 %v155
    %347 = vmatprep.mubr.f32.mxu0 %v137
    %348 = vmatmul.mubr.f32.gmra.mxu0 %v135
    %v349 = vpop.f32.mrf.mxu0
    %v350 = vadd.f32 %v275, %v349
    %v351 = vpop.f32.mrf.mxu0
    %352 = vmatprep.mubr.f32.mxu0 %v138
    %353 = vmatmul.mubr.f32.gmra.mxu0 %v136
    %v354 = vpop.f32.mrf.mxu0
    %v355 = vadd.f32 %v280, %v354
    %v356 = vpop.f32.mrf.mxu0
    %357 = vdwg.mxu0
    %v358 = vld [vmem:[#allocation2 + $0x5] sm:$0xff]
    %v359 = vld [vmem:[#allocation2 + $0xd] sm:$0xff]
    %v360 = vld [vmem:[#allocation2 + $0x6] sm:$0xff]
    %v361 = vld [vmem:[#allocation2 + $0xe] sm:$0xff]
    %s362 = scalar_lea.vmem [#allocation3], 512
    %v363 = vld [vmem:[%s362] sm:$0xff]
    %v364 = vld [vmem:[%s362 + $0x8] sm:$0xff]
    %v365 = vld [vmem:[%s362 + $0x10] sm:$0xff]
    %v366 = vld [vmem:[%s362 + $0x18] sm:$0xff]
    %v367 = vld [vmem:[%s362 + $0x20] sm:$0xff]
    %v368 = vld [vmem:[%s362 + $0x28] sm:$0xff]
    %v369 = vld [vmem:[%s362 + $0x30] sm:$0xff]
    %v370 = vld [vmem:[%s362 + $0x38] sm:$0xff]
    %v371 = vld [vmem:[%s362 + $0x40] sm:$0xff]
    %v372 = vld [vmem:[%s362 + $0x48] sm:$0xff]
    %v373 = vld [vmem:[%s362 + $0x50] sm:$0xff]
    %v374 = vld [vmem:[%s362 + $0x58] sm:$0xff]
    %v375 = vld [vmem:[%s362 + $0x60] sm:$0xff]
    %v376 = vld [vmem:[%s362 + $0x68] sm:$0xff]
    %v377 = vld [vmem:[%s362 + $0x70] sm:$0xff]
    %v378 = vld [vmem:[%s362 + $0x78] sm:$0xff]
    %v379 = vld [vmem:[%s362 + $0x80] sm:$0xff]
    %v380 = vld [vmem:[%s362 + $0x88] sm:$0xff]
    %v381 = vld [vmem:[%s362 + $0x90] sm:$0xff]
    %v382 = vld [vmem:[%s362 + $0x98] sm:$0xff]
    %v383 = vld [vmem:[%s362 + $0xa0] sm:$0xff]
    %v384 = vld [vmem:[%s362 + $0xa8] sm:$0xff]
    %v385 = vld [vmem:[%s362 + $0xb0] sm:$0xff]
    %v386 = vld [vmem:[%s362 + $0xb8] sm:$0xff]
    %v387 = vld [vmem:[%s362 + $0xc0] sm:$0xff]
    %v388 = vld [vmem:[%s362 + $0xc8] sm:$0xff]
    %v389 = vld [vmem:[%s362 + $0xd0] sm:$0xff]
    %v390 = vld [vmem:[%s362 + $0xd8] sm:$0xff]
    %v391 = vld [vmem:[%s362 + $0xe0] sm:$0xff]
    %v392 = vld [vmem:[%s362 + $0xe8] sm:$0xff]
    %v393 = vld [vmem:[%s362 + $0xf0] sm:$0xff]
    %v394 = vld [vmem:[%s362 + $0xf8] sm:$0xff]
    %395 = vmatprep.subr.mxu0 0.0
    %396 = vmatpush1.msra.mxu0 %v378
    %397 = vmatprep.subr.mxu0 0.0
    %398 = vmatpush1.msra.mxu0 %v377
    %399 = vmatprep.subr.mxu0 0.0
    %400 = vmatpush1.msra.mxu0 %v376
    %401 = vmatprep.subr.mxu0 0.0
    %402 = vmatpush1.msra.mxu0 %v375
    %403 = vmatprep.subr.mxu0 0.0
    %404 = vmatpush1.msra.mxu0 %v374
    %405 = vmatprep.subr.mxu0 0.0
    %406 = vmatpush1.msra.mxu0 %v373
    %407 = vmatprep.subr.mxu0 0.0
    %408 = vmatpush1.msra.mxu0 %v372
    %409 = vmatprep.subr.mxu0 0.0
    %410 = vmatpush1.msra.mxu0 %v371
    %411 = vmatprep.subr.mxu0 0.0
    %412 = vmatpush1.msra.mxu0 %v370
    %413 = vmatprep.subr.mxu0 0.0
    %414 = vmatpush1.msra.mxu0 %v369
    %415 = vmatprep.subr.mxu0 0.0
    %416 = vmatpush1.msra.mxu0 %v368
    %417 = vmatprep.subr.mxu0 0.0
    %418 = vmatpush1.msra.mxu0 %v367
    %419 = vmatprep.subr.mxu0 0.0
    %420 = vmatpush1.msra.mxu0 %v366
    %421 = vmatprep.subr.mxu0 0.0
    %422 = vmatpush1.msra.mxu0 %v365
    %423 = vmatprep.subr.mxu0 0.0
    %424 = vmatpush1.msra.mxu0 %v364
    %425 = vmatprep.subr.mxu0 0.0
    %426 = vmatpush1.msra.mxu0 %v363
    %427 = vmatprep.subr.mxu0 0.0
    %428 = vmatpush2.msra.mxu0 %v394
    %429 = vmatprep.subr.mxu0 0.0
    %430 = vmatpush2.msra.mxu0 %v393
    %431 = vmatprep.subr.mxu0 0.0
    %432 = vmatpush2.msra.mxu0 %v392
    %433 = vmatprep.subr.mxu0 0.0
    %434 = vmatpush2.msra.mxu0 %v391
    %435 = vmatprep.subr.mxu0 0.0
    %436 = vmatpush2.msra.mxu0 %v390
    %437 = vmatprep.subr.mxu0 0.0
    %438 = vmatpush2.msra.mxu0 %v389
    %439 = vmatprep.subr.mxu0 0.0
    %440 = vmatpush2.msra.mxu0 %v388
    %441 = vmatprep.subr.mxu0 0.0
    %442 = vmatpush2.msra.mxu0 %v387
    %443 = vmatprep.subr.mxu0 0.0
    %444 = vmatpush2.msra.mxu0 %v386
    %445 = vmatprep.subr.mxu0 0.0
    %446 = vmatpush2.msra.mxu0 %v385
    %447 = vmatprep.subr.mxu0 0.0
    %448 = vmatpush2.msra.mxu0 %v384
    %449 = vmatprep.subr.mxu0 0.0
    %450 = vmatpush2.msra.mxu0 %v383
    %451 = vmatprep.subr.mxu0 0.0
    %452 = vmatpush2.msra.mxu0 %v382
    %453 = vmatprep.subr.mxu0 0.0
    %454 = vmatpush2.msra.mxu0 %v381
    %455 = vmatprep.subr.mxu0 0.0
    %456 = vmatpush2.msra.mxu0 %v380
    %457 = vmatprep.subr.mxu0 0.0
    %458 = vmatpush2.msra.mxu0 %v379
    %459 = vmatprep.mubr.f32.mxu0 %v360
    %460 = vmatmul.mubr.f32.gmra.mxu0 %v358
    %v461 = vpop.f32.mrf.mxu0
    %v462 = vadd.f32 0.0, %v461
    %v463 = vpop.f32.mrf.mxu0
    %464 = vmatprep.mubr.f32.mxu0 %v361
    %465 = vmatmul.mubr.f32.gmra.mxu0 %v359
    %v466 = vpop.f32.mrf.mxu0
    %v467 = vadd.f32 0.0, %v466
    %v468 = vpop.f32.mrf.mxu0
    %469 = vdwg.mxu0
    %v470 = vadd.f32 %v350, %v462
    %v471 = vadd.f32 %v355, %v467
    %v472 = vld [vmem:[#allocation2 + $0x7] sm:$0xff]
    %v473 = vld [vmem:[#allocation2 + $0xf] sm:$0xff]
    %v474 = vld [vmem:[#allocation2 + $0x8] sm:$0xff]
    %v475 = vld [vmem:[#allocation2 + $0x10] sm:$0xff]
    %s476 = scalar_lea.vmem [#allocation3], 768
    %v477 = vld [vmem:[%s476] sm:$0xff]
    %v478 = vld [vmem:[%s476 + $0x8] sm:$0xff]
    %v479 = vld [vmem:[%s476 + $0x10] sm:$0xff]
    %v480 = vld [vmem:[%s476 + $0x18] sm:$0xff]
    %v481 = vld [vmem:[%s476 + $0x20] sm:$0xff]
    %v482 = vld [vmem:[%s476 + $0x28] sm:$0xff]
    %v483 = vld [vmem:[%s476 + $0x30] sm:$0xff]
    %v484 = vld [vmem:[%s476 + $0x38] sm:$0xff]
    %v485 = vld [vmem:[%s476 + $0x40] sm:$0xff]
    %v486 = vld [vmem:[%s476 + $0x48] sm:$0xff]
    %v487 = vld [vmem:[%s476 + $0x50] sm:$0xff]
    %v488 = vld [vmem:[%s476 + $0x58] sm:$0xff]
    %v489 = vld [vmem:[%s476 + $0x60] sm:$0xff]
    %v490 = vld [vmem:[%s476 + $0x68] sm:$0xff]
    %v491 = vld [vmem:[%s476 + $0x70] sm:$0xff]
    %v492 = vld [vmem:[%s476 + $0x78] sm:$0xff]
    %v493 = vld [vmem:[%s476 + $0x80] sm:$0xff]
    %v494 = vld [vmem:[%s476 + $0x88] sm:$0xff]
    %v495 = vld [vmem:[%s476 + $0x90] sm:$0xff]
    %v496 = vld [vmem:[%s476 + $0x98] sm:$0xff]
    %v497 = vld [vmem:[%s476 + $0xa0] sm:$0xff]
    %v498 = vld [vmem:[%s476 + $0xa8] sm:$0xff]
    %v499 = vld [vmem:[%s476 + $0xb0] sm:$0xff]
    %v500 = vld [vmem:[%s476 + $0xb8] sm:$0xff]
    %v501 = vld [vmem:[%s476 + $0xc0] sm:$0xff]
    %v502 = vld [vmem:[%s476 + $0xc8] sm:$0xff]
    %v503 = vld [vmem:[%s476 + $0xd0] sm:$0xff]
    %v504 = vld [vmem:[%s476 + $0xd8] sm:$0xff]
    %v505 = vld [vmem:[%s476 + $0xe0] sm:$0xff]
    %v506 = vld [vmem:[%s476 + $0xe8] sm:$0xff]
    %v507 = vld [vmem:[%s476 + $0xf0] sm:$0xff]
    %v508 = vld [vmem:[%s476 + $0xf8] sm:$0xff]
    %509 = vmatprep.subr.mxu0 0.0
    %510 = vmatpush1.msra.mxu0 %v492
    %511 = vmatprep.subr.mxu0 0.0
    %512 = vmatpush1.msra.mxu0 %v491
    %513 = vmatprep.subr.mxu0 0.0
    %514 = vmatpush1.msra.mxu0 %v490
    %515 = vmatprep.subr.mxu0 0.0
    %516 = vmatpush1.msra.mxu0 %v489
    %517 = vmatprep.subr.mxu0 0.0
    %518 = vmatpush1.msra.mxu0 %v488
    %519 = vmatprep.subr.mxu0 0.0
    %520 = vmatpush1.msra.mxu0 %v487
    %521 = vmatprep.subr.mxu0 0.0
    %522 = vmatpush1.msra.mxu0 %v486
    %523 = vmatprep.subr.mxu0 0.0
    %524 = vmatpush1.msra.mxu0 %v485
    %525 = vmatprep.subr.mxu0 0.0
    %526 = vmatpush1.msra.mxu0 %v484
    %527 = vmatprep.subr.mxu0 0.0
    %528 = vmatpush1.msra.mxu0 %v483
    %529 = vmatprep.subr.mxu0 0.0
    %530 = vmatpush1.msra.mxu0 %v482
    %531 = vmatprep.subr.mxu0 0.0
    %532 = vmatpush1.msra.mxu0 %v481
    %533 = vmatprep.subr.mxu0 0.0
    %534 = vmatpush1.msra.mxu0 %v480
    %535 = vmatprep.subr.mxu0 0.0
    %536 = vmatpush1.msra.mxu0 %v479
    %537 = vmatprep.subr.mxu0 0.0
    %538 = vmatpush1.msra.mxu0 %v478
    %539 = vmatprep.subr.mxu0 0.0
    %540 = vmatpush1.msra.mxu0 %v477
    %541 = vmatprep.subr.mxu0 0.0
    %542 = vmatpush2.msra.mxu0 %v508
    %543 = vmatprep.subr.mxu0 0.0
    %544 = vmatpush2.msra.mxu0 %v507
    %545 = vmatprep.subr.mxu0 0.0
    %546 = vmatpush2.msra.mxu0 %v506
    %547 = vmatprep.subr.mxu0 0.0
    %548 = vmatpush2.msra.mxu0 %v505
    %549 = vmatprep.subr.mxu0 0.0
    %550 = vmatpush2.msra.mxu0 %v504
    %551 = vmatprep.subr.mxu0 0.0
    %552 = vmatpush2.msra.mxu0 %v503
    %553 = vmatprep.subr.mxu0 0.0
    %554 = vmatpush2.msra.mxu0 %v502
    %555 = vmatprep.subr.mxu0 0.0
    %556 = vmatpush2.msra.mxu0 %v501
    %557 = vmatprep.subr.mxu0 0.0
    %558 = vmatpush2.msra.mxu0 %v500
    %559 = vmatprep.subr.mxu0 0.0
    %560 = vmatpush2.msra.mxu0 %v499
    %561 = vmatprep.subr.mxu0 0.0
    %562 = vmatpush2.msra.mxu0 %v498
    %563 = vmatprep.subr.mxu0 0.0
    %564 = vmatpush2.msra.mxu0 %v497
    %565 = vmatprep.subr.mxu0 0.0
    %566 = vmatpush2.msra.mxu0 %v496
    %567 = vmatprep.subr.mxu0 0.0
    %568 = vmatpush2.msra.mxu0 %v495
    %569 = vmatprep.subr.mxu0 0.0
    %570 = vmatpush2.msra.mxu0 %v494
    %571 = vmatprep.subr.mxu0 0.0
    %572 = vmatpush2.msra.mxu0 %v493
    %573 = vmatprep.mubr.f32.mxu0 %v474
    %574 = vmatmul.mubr.f32.gmra.mxu0 %v472
    %v575 = vpop.f32.mrf.mxu0
    %v576 = vadd.f32 0.0, %v575
    %v577 = vpop.f32.mrf.mxu0
    %578 = vmatprep.mubr.f32.mxu0 %v475
    %579 = vmatmul.mubr.f32.gmra.mxu0 %v473
    %v580 = vpop.f32.mrf.mxu0
    %v581 = vadd.f32 0.0, %v580
    %v582 = vpop.f32.mrf.mxu0
    %583 = vdwg.mxu0
    %v584 = vadd.f32 %v470, %v576
    %v585 = vadd.f32 %v471, %v581
    %v586 = vld [vmem:[#allocation2 + $0x9] sm:$0xff]
    %v587 = vld [vmem:[#allocation2 + $0x11] sm:$0xff]
    %v588 = vld [vmem:[#allocation2 + $0xa] sm:$0xff]
    %v589 = vld [vmem:[#allocation2 + $0x12] sm:$0xff]
    %s590 = scalar_lea.vmem [#allocation3], 1024
    %v591 = vld [vmem:[%s590] sm:$0xff]
    %v592 = vld [vmem:[%s590 + $0x8] sm:$0xff]
    %v593 = vld [vmem:[%s590 + $0x10] sm:$0xff]
    %v594 = vld [vmem:[%s590 + $0x18] sm:$0xff]
    %v595 = vld [vmem:[%s590 + $0x20] sm:$0xff]
    %v596 = vld [vmem:[%s590 + $0x28] sm:$0xff]
    %v597 = vld [vmem:[%s590 + $0x30] sm:$0xff]
    %v598 = vld [vmem:[%s590 + $0x38] sm:$0xff]
    %v599 = vld [vmem:[%s590 + $0x40] sm:$0xff]
    %v600 = vld [vmem:[%s590 + $0x48] sm:$0xff]
    %v601 = vld [vmem:[%s590 + $0x50] sm:$0xff]
    %v602 = vld [vmem:[%s590 + $0x58] sm:$0xff]
    %v603 = vld [vmem:[%s590 + $0x60] sm:$0xff]
    %v604 = vld [vmem:[%s590 + $0x68] sm:$0xff]
    %v605 = vld [vmem:[%s590 + $0x70] sm:$0xff]
    %v606 = vld [vmem:[%s590 + $0x78] sm:$0xff]
    %v607 = vld [vmem:[%s590 + $0x80] sm:$0xff]
    %v608 = vld [vmem:[%s590 + $0x88] sm:$0xff]
    %v609 = vld [vmem:[%s590 + $0x90] sm:$0xff]
    %v610 = vld [vmem:[%s590 + $0x98] sm:$0xff]
    %v611 = vld [vmem:[%s590 + $0xa0] sm:$0xff]
    %v612 = vld [vmem:[%s590 + $0xa8] sm:$0xff]
    %v613 = vld [vmem:[%s590 + $0xb0] sm:$0xff]
    %v614 = vld [vmem:[%s590 + $0xb8] sm:$0xff]
    %v615 = vld [vmem:[%s590 + $0xc0] sm:$0xff]
    %v616 = vld [vmem:[%s590 + $0xc8] sm:$0xff]
    %v617 = vld [vmem:[%s590 + $0xd0] sm:$0xff]
    %v618 = vld [vmem:[%s590 + $0xd8] sm:$0xff]
    %v619 = vld [vmem:[%s590 + $0xe0] sm:$0xff]
    %v620 = vld [vmem:[%s590 + $0xe8] sm:$0xff]
    %v621 = vld [vmem:[%s590 + $0xf0] sm:$0xff]
    %v622 = vld [vmem:[%s590 + $0xf8] sm:$0xff]
    %623 = vmatprep.subr.mxu0 0.0
    %624 = vmatpush1.msra.mxu0 %v606
    %625 = vmatprep.subr.mxu0 0.0
    %626 = vmatpush1.msra.mxu0 %v605
    %627 = vmatprep.subr.mxu0 0.0
    %628 = vmatpush1.msra.mxu0 %v604
    %629 = vmatprep.subr.mxu0 0.0
    %630 = vmatpush1.msra.mxu0 %v603
    %631 = vmatprep.subr.mxu0 0.0
    %632 = vmatpush1.msra.mxu0 %v602
    %633 = vmatprep.subr.mxu0 0.0
    %634 = vmatpush1.msra.mxu0 %v601
    %635 = vmatprep.subr.mxu0 0.0
    %636 = vmatpush1.msra.mxu0 %v600
    %637 = vmatprep.subr.mxu0 0.0
    %638 = vmatpush1.msra.mxu0 %v599
    %639 = vmatprep.subr.mxu0 0.0
    %640 = vmatpush1.msra.mxu0 %v598
    %641 = vmatprep.subr.mxu0 0.0
    %642 = vmatpush1.msra.mxu0 %v597
    %643 = vmatprep.subr.mxu0 0.0
    %644 = vmatpush1.msra.mxu0 %v596
    %645 = vmatprep.subr.mxu0 0.0
    %646 = vmatpush1.msra.mxu0 %v595
    %647 = vmatprep.subr.mxu0 0.0
    %648 = vmatpush1.msra.mxu0 %v594
    %649 = vmatprep.subr.mxu0 0.0
    %650 = vmatpush1.msra.mxu0 %v593
    %651 = vmatprep.subr.mxu0 0.0
    %652 = vmatpush1.msra.mxu0 %v592
    %653 = vmatprep.subr.mxu0 0.0
    %654 = vmatpush1.msra.mxu0 %v591
    %655 = vmatprep.subr.mxu0 0.0
    %656 = vmatpush2.msra.mxu0 %v622
    %657 = vmatprep.subr.mxu0 0.0
    %658 = vmatpush2.msra.mxu0 %v621
    %659 = vmatprep.subr.mxu0 0.0
    %660 = vmatpush2.msra.mxu0 %v620
    %661 = vmatprep.subr.mxu0 0.0
    %662 = vmatpush2.msra.mxu0 %v619
    %663 = vmatprep.subr.mxu0 0.0
    %664 = vmatpush2.msra.mxu0 %v618
    %665 = vmatprep.subr.mxu0 0.0
    %666 = vmatpush2.msra.mxu0 %v617
    %667 = vmatprep.subr.mxu0 0.0
    %668 = vmatpush2.msra.mxu0 %v616
    %669 = vmatprep.subr.mxu0 0.0
    %670 = vmatpush2.msra.mxu0 %v615
    %671 = vmatprep.subr.mxu0 0.0
    %672 = vmatpush2.msra.mxu0 %v614
    %673 = vmatprep.subr.mxu0 0.0
    %674 = vmatpush2.msra.mxu0 %v613
    %675 = vmatprep.subr.mxu0 0.0
    %676 = vmatpush2.msra.mxu0 %v612
    %677 = vmatprep.subr.mxu0 0.0
    %678 = vmatpush2.msra.mxu0 %v611
    %679 = vmatprep.subr.mxu0 0.0
    %680 = vmatpush2.msra.mxu0 %v610
    %681 = vmatprep.subr.mxu0 0.0
    %682 = vmatpush2.msra.mxu0 %v609
    %683 = vmatprep.subr.mxu0 0.0
    %684 = vmatpush2.msra.mxu0 %v608
    %685 = vmatprep.subr.mxu0 0.0
    %686 = vmatpush2.msra.mxu0 %v607
    %687 = vmatprep.mubr.f32.mxu0 %v588
    %688 = vmatmul.mubr.f32.gmra.mxu0 %v586
    %v689 = vpop.f32.mrf.mxu0
    %v690 = vadd.f32 0.0, %v689
    %v691 = vpop.f32.mrf.mxu0
    %692 = vmatprep.mubr.f32.mxu0 %v589
    %693 = vmatmul.mubr.f32.gmra.mxu0 %v587
    %v694 = vpop.f32.mrf.mxu0
    %v695 = vadd.f32 0.0, %v694
    %v696 = vpop.f32.mrf.mxu0
    %697 = vdwg.mxu0
    %v698 = vadd.f32 %v584, %v690
    %v699 = vadd.f32 %v585, %v695
    %v700 = vld [vmem:[#allocation2 + $0xb] sm:$0xff]
    %v701 = vld [vmem:[#allocation2 + $0x13] sm:$0xff]
    %v702 = vld [vmem:[#allocation2 + $0xc] sm:$0xff]
    %v703 = vld [vmem:[#allocation2 + $0x14] sm:$0xff]
    %s704 = scalar_lea.vmem [#allocation3], 1280
    %v705 = vld [vmem:[%s704] sm:$0xff]
    %v706 = vld [vmem:[%s704 + $0x8] sm:$0xff]
    %v707 = vld [vmem:[%s704 + $0x10] sm:$0xff]
    %v708 = vld [vmem:[%s704 + $0x18] sm:$0xff]
    %v709 = vld [vmem:[%s704 + $0x20] sm:$0xff]
    %v710 = vld [vmem:[%s704 + $0x28] sm:$0xff]
    %v711 = vld [vmem:[%s704 + $0x30] sm:$0xff]
    %v712 = vld [vmem:[%s704 + $0x38] sm:$0xff]
    %v713 = vld [vmem:[%s704 + $0x40] sm:$0xff]
    %v714 = vld [vmem:[%s704 + $0x48] sm:$0xff]
    %v715 = vld [vmem:[%s704 + $0x50] sm:$0xff]
    %v716 = vld [vmem:[%s704 + $0x58] sm:$0xff]
    %v717 = vld [vmem:[%s704 + $0x60] sm:$0xff]
    %v718 = vld [vmem:[%s704 + $0x68] sm:$0xff]
    %v719 = vld [vmem:[%s704 + $0x70] sm:$0xff]
    %v720 = vld [vmem:[%s704 + $0x78] sm:$0xff]
    %v721 = vld [vmem:[%s704 + $0x80] sm:$0xff]
    %v722 = vld [vmem:[%s704 + $0x88] sm:$0xff]
    %v723 = vld [vmem:[%s704 + $0x90] sm:$0xff]
    %v724 = vld [vmem:[%s704 + $0x98] sm:$0xff]
    %v725 = vld [vmem:[%s704 + $0xa0] sm:$0xff]
    %v726 = vld [vmem:[%s704 + $0xa8] sm:$0xff]
    %v727 = vld [vmem:[%s704 + $0xb0] sm:$0xff]
    %v728 = vld [vmem:[%s704 + $0xb8] sm:$0xff]
    %v729 = vld [vmem:[%s704 + $0xc0] sm:$0xff]
    %v730 = vld [vmem:[%s704 + $0xc8] sm:$0xff]
    %v731 = vld [vmem:[%s704 + $0xd0] sm:$0xff]
    %v732 = vld [vmem:[%s704 + $0xd8] sm:$0xff]
    %v733 = vld [vmem:[%s704 + $0xe0] sm:$0xff]
    %v734 = vld [vmem:[%s704 + $0xe8] sm:$0xff]
    %v735 = vld [vmem:[%s704 + $0xf0] sm:$0xff]
    %v736 = vld [vmem:[%s704 + $0xf8] sm:$0xff]
    %737 = vmatprep.subr.mxu0 0.0
    %738 = vmatpush1.msra.mxu0 %v720
    %739 = vmatprep.subr.mxu0 0.0
    %740 = vmatpush1.msra.mxu0 %v719
    %741 = vmatprep.subr.mxu0 0.0
    %742 = vmatpush1.msra.mxu0 %v718
    %743 = vmatprep.subr.mxu0 0.0
    %744 = vmatpush1.msra.mxu0 %v717
    %745 = vmatprep.subr.mxu0 0.0
    %746 = vmatpush1.msra.mxu0 %v716
    %747 = vmatprep.subr.mxu0 0.0
    %748 = vmatpush1.msra.mxu0 %v715
    %749 = vmatprep.subr.mxu0 0.0
    %750 = vmatpush1.msra.mxu0 %v714
    %751 = vmatprep.subr.mxu0 0.0
    %752 = vmatpush1.msra.mxu0 %v713
    %753 = vmatprep.subr.mxu0 0.0
    %754 = vmatpush1.msra.mxu0 %v712
    %755 = vmatprep.subr.mxu0 0.0
    %756 = vmatpush1.msra.mxu0 %v711
    %757 = vmatprep.subr.mxu0 0.0
    %758 = vmatpush1.msra.mxu0 %v710
    %759 = vmatprep.subr.mxu0 0.0
    %760 = vmatpush1.msra.mxu0 %v709
    %761 = vmatprep.subr.mxu0 0.0
    %762 = vmatpush1.msra.mxu0 %v708
    %763 = vmatprep.subr.mxu0 0.0
    %764 = vmatpush1.msra.mxu0 %v707
    %765 = vmatprep.subr.mxu0 0.0
    %766 = vmatpush1.msra.mxu0 %v706
    %767 = vmatprep.subr.mxu0 0.0
    %768 = vmatpush1.msra.mxu0 %v705
    %769 = vmatprep.subr.mxu0 0.0
    %770 = vmatpush2.msra.mxu0 %v736
    %771 = vmatprep.subr.mxu0 0.0
    %772 = vmatpush2.msra.mxu0 %v735
    %773 = vmatprep.subr.mxu0 0.0
    %774 = vmatpush2.msra.mxu0 %v734
    %775 = vmatprep.subr.mxu0 0.0
    %776 = vmatpush2.msra.mxu0 %v733
    %777 = vmatprep.subr.mxu0 0.0
    %778 = vmatpush2.msra.mxu0 %v732
    %779 = vmatprep.subr.mxu0 0.0
    %780 = vmatpush2.msra.mxu0 %v731
    %781 = vmatprep.subr.mxu0 0.0
    %782 = vmatpush2.msra.mxu0 %v730
    %783 = vmatprep.subr.mxu0 0.0
    %784 = vmatpush2.msra.mxu0 %v729
    %785 = vmatprep.subr.mxu0 0.0
    %786 = vmatpush2.msra.mxu0 %v728
    %787 = vmatprep.subr.mxu0 0.0
    %788 = vmatpush2.msra.mxu0 %v727
    %789 = vmatprep.subr.mxu0 0.0
    %790 = vmatpush2.msra.mxu0 %v726
    %791 = vmatprep.subr.mxu0 0.0
    %792 = vmatpush2.msra.mxu0 %v725
    %793 = vmatprep.subr.mxu0 0.0
    %794 = vmatpush2.msra.mxu0 %v724
    %795 = vmatprep.subr.mxu0 0.0
    %796 = vmatpush2.msra.mxu0 %v723
    %797 = vmatprep.subr.mxu0 0.0
    %798 = vmatpush2.msra.mxu0 %v722
    %799 = vmatprep.subr.mxu0 0.0
    %800 = vmatpush2.msra.mxu0 %v721
    %801 = vmatprep.mubr.f32.mxu0 %v702
    %802 = vmatmul.mubr.f32.gmra.mxu0 %v700
    %v803 = vpop.f32.mrf.mxu0
    %v804 = vadd.f32 0.0, %v803
    %v805 = vpop.f32.mrf.mxu0
    %806 = vmatprep.mubr.f32.mxu0 %v703
    %807 = vmatmul.mubr.f32.gmra.mxu0 %v701
    %v808 = vpop.f32.mrf.mxu0
    %v809 = vadd.f32 0.0, %v808
    %v810 = vpop.f32.mrf.mxu0
    %811 = vdwg.mxu0
    %v812 = vadd.f32 %v698, %v804
    %v813 = vadd.f32 %v699, %v809
    %v814 = vld [vmem:[#allocation2 + $0xd] sm:$0xff]
    %v815 = vld [vmem:[#allocation2 + $0x15] sm:$0xff]
    %v816 = vld [vmem:[#allocation2 + $0xe] sm:$0xff]
    %v817 = vld [vmem:[#allocation2 + $0x16] sm:$0xff]
    %s818 = scalar_lea.vmem [#allocation3], 1536
    %v819 = vld [vmem:[%s818] sm:$0xff]
    %v820 = vld [vmem:[%s818 + $0x8] sm:$0xff]
    %v821 = vld [vmem:[%s818 + $0x10] sm:$0xff]
    %v822 = vld [vmem:[%s818 + $0x18] sm:$0xff]
    %v823 = vld [vmem:[%s818 + $0x20] sm:$0xff]
    %v824 = vld [vmem:[%s818 + $0x28] sm:$0xff]
    %v825 = vld [vmem:[%s818 + $0x30] sm:$0xff]
    %v826 = vld [vmem:[%s818 + $0x38] sm:$0xff]
    %v827 = vld [vmem:[%s818 + $0x40] sm:$0xff]
    %v828 = vld [vmem:[%s818 + $0x48] sm:$0xff]
    %v829 = vld [vmem:[%s818 + $0x50] sm:$0xff]
    %v830 = vld [vmem:[%s818 + $0x58] sm:$0xff]
    %v831 = vld [vmem:[%s818 + $0x60] sm:$0xff]
    %v832 = vld [vmem:[%s818 + $0x68] sm:$0xff]
    %v833 = vld [vmem:[%s818 + $0x70] sm:$0xff]
    %v834 = vld [vmem:[%s818 + $0x78] sm:$0xff]
    %v835 = vld [vmem:[%s818 + $0x80] sm:$0xff]
    %v836 = vld [vmem:[%s818 + $0x88] sm:$0xff]
    %v837 = vld [vmem:[%s818 + $0x90] sm:$0xff]
    %v838 = vld [vmem:[%s818 + $0x98] sm:$0xff]
    %v839 = vld [vmem:[%s818 + $0xa0] sm:$0xff]
    %v840 = vld [vmem:[%s818 + $0xa8] sm:$0xff]
    %v841 = vld [vmem:[%s818 + $0xb0] sm:$0xff]
    %v842 = vld [vmem:[%s818 + $0xb8] sm:$0xff]
    %v843 = vld [vmem:[%s818 + $0xc0] sm:$0xff]
    %v844 = vld [vmem:[%s818 + $0xc8] sm:$0xff]
    %v845 = vld [vmem:[%s818 + $0xd0] sm:$0xff]
    %v846 = vld [vmem:[%s818 + $0xd8] sm:$0xff]
    %v847 = vld [vmem:[%s818 + $0xe0] sm:$0xff]
    %v848 = vld [vmem:[%s818 + $0xe8] sm:$0xff]
    %v849 = vld [vmem:[%s818 + $0xf0] sm:$0xff]
    %v850 = vld [vmem:[%s818 + $0xf8] sm:$0xff]
    %851 = vmatprep.subr.mxu0 0.0
    %852 = vmatpush1.msra.mxu0 %v834
    %853 = vmatprep.subr.mxu0 0.0
    %854 = vmatpush1.msra.mxu0 %v833
    %855 = vmatprep.subr.mxu0 0.0
    %856 = vmatpush1.msra.mxu0 %v832
    %857 = vmatprep.subr.mxu0 0.0
    %858 = vmatpush1.msra.mxu0 %v831
    %859 = vmatprep.subr.mxu0 0.0
    %860 = vmatpush1.msra.mxu0 %v830
    %861 = vmatprep.subr.mxu0 0.0
    %862 = vmatpush1.msra.mxu0 %v829
    %863 = vmatprep.subr.mxu0 0.0
    %864 = vmatpush1.msra.mxu0 %v828
    %865 = vmatprep.subr.mxu0 0.0
    %866 = vmatpush1.msra.mxu0 %v827
    %867 = vmatprep.subr.mxu0 0.0
    %868 = vmatpush1.msra.mxu0 %v826
    %869 = vmatprep.subr.mxu0 0.0
    %870 = vmatpush1.msra.mxu0 %v825
    %871 = vmatprep.subr.mxu0 0.0
    %872 = vmatpush1.msra.mxu0 %v824
    %873 = vmatprep.subr.mxu0 0.0
    %874 = vmatpush1.msra.mxu0 %v823
    %875 = vmatprep.subr.mxu0 0.0
    %876 = vmatpush1.msra.mxu0 %v822
    %877 = vmatprep.subr.mxu0 0.0
    %878 = vmatpush1.msra.mxu0 %v821
    %879 = vmatprep.subr.mxu0 0.0
    %880 = vmatpush1.msra.mxu0 %v820
    %881 = vmatprep.subr.mxu0 0.0
    %882 = vmatpush1.msra.mxu0 %v819
    %883 = vmatprep.subr.mxu0 0.0
    %884 = vmatpush2.msra.mxu0 %v850
    %885 = vmatprep.subr.mxu0 0.0
    %886 = vmatpush2.msra.mxu0 %v849
    %887 = vmatprep.subr.mxu0 0.0
    %888 = vmatpush2.msra.mxu0 %v848
    %889 = vmatprep.subr.mxu0 0.0
    %890 = vmatpush2.msra.mxu0 %v847
    %891 = vmatprep.subr.mxu0 0.0
    %892 = vmatpush2.msra.mxu0 %v846
    %893 = vmatprep.subr.mxu0 0.0
    %894 = vmatpush2.msra.mxu0 %v845
    %895 = vmatprep.subr.mxu0 0.0
    %896 = vmatpush2.msra.mxu0 %v844
    %897 = vmatprep.subr.mxu0 0.0
    %898 = vmatpush2.msra.mxu0 %v843
    %899 = vmatprep.subr.mxu0 0.0
    %900 = vmatpush2.msra.mxu0 %v842
    %901 = vmatprep.subr.mxu0 0.0
    %902 = vmatpush2.msra.mxu0 %v841
    %903 = vmatprep.subr.mxu0 0.0
    %904 = vmatpush2.msra.mxu0 %v840
    %905 = vmatprep.subr.mxu0 0.0
    %906 = vmatpush2.msra.mxu0 %v839
    %907 = vmatprep.subr.mxu0 0.0
    %908 = vmatpush2.msra.mxu0 %v838
    %909 = vmatprep.subr.mxu0 0.0
    %910 = vmatpush2.msra.mxu0 %v837
    %911 = vmatprep.subr.mxu0 0.0
    %912 = vmatpush2.msra.mxu0 %v836
    %913 = vmatprep.subr.mxu0 0.0
    %914 = vmatpush2.msra.mxu0 %v835
    %915 = vmatprep.mubr.f32.mxu0 %v816
    %916 = vmatmul.mubr.f32.gmra.mxu0 %v814
    %v917 = vpop.f32.mrf.mxu0
    %v918 = vadd.f32 0.0, %v917
    %v919 = vpop.f32.mrf.mxu0
    %920 = vmatprep.mubr.f32.mxu0 %v817
    %921 = vmatmul.mubr.f32.gmra.mxu0 %v815
    %v922 = vpop.f32.mrf.mxu0
    %v923 = vadd.f32 0.0, %v922
    %v924 = vpop.f32.mrf.mxu0
    %925 = vdwg.mxu0
    %v926 = vadd.f32 %v812, %v918
    %v927 = vadd.f32 %v813, %v923
    %v928 = vld [vmem:[#allocation2 + $0xf] sm:$0xff]
    %v929 = vld [vmem:[#allocation2 + $0x17] sm:$0xff]
    %s930 = scalar_lea.vmem [#allocation3], 1792
    %v931 = vld [vmem:[%s930] sm:$0xff]
    %v932 = vld [vmem:[%s930 + $0x8] sm:$0xff]
    %v933 = vld [vmem:[%s930 + $0x10] sm:$0xff]
    %v934 = vld [vmem:[%s930 + $0x18] sm:$0xff]
    %v935 = vld [vmem:[%s930 + $0x20] sm:$0xff]
    %v936 = vld [vmem:[%s930 + $0x28] sm:$0xff]
    %v937 = vld [vmem:[%s930 + $0x30] sm:$0xff]
    %v938 = vld [vmem:[%s930 + $0x38] sm:$0xff]
    %v939 = vld [vmem:[%s930 + $0x40] sm:$0xff]
    %v940 = vld [vmem:[%s930 + $0x48] sm:$0xff]
    %v941 = vld [vmem:[%s930 + $0x50] sm:$0xff]
    %v942 = vld [vmem:[%s930 + $0x58] sm:$0xff]
    %v943 = vld [vmem:[%s930 + $0x60] sm:$0xff]
    %v944 = vld [vmem:[%s930 + $0x68] sm:$0xff]
    %v945 = vld [vmem:[%s930 + $0x70] sm:$0xff]
    %v946 = vld [vmem:[%s930 + $0x78] sm:$0xff]
    %v947 = vld [vmem:[%s930 + $0x80] sm:$0xff]
    %v948 = vld [vmem:[%s930 + $0x88] sm:$0xff]
    %v949 = vld [vmem:[%s930 + $0x90] sm:$0xff]
    %v950 = vld [vmem:[%s930 + $0x98] sm:$0xff]
    %v951 = vld [vmem:[%s930 + $0xa0] sm:$0xff]
    %v952 = vld [vmem:[%s930 + $0xa8] sm:$0xff]
    %v953 = vld [vmem:[%s930 + $0xb0] sm:$0xff]
    %v954 = vld [vmem:[%s930 + $0xb8] sm:$0xff]
    %v955 = vld [vmem:[%s930 + $0xc0] sm:$0xff]
    %v956 = vld [vmem:[%s930 + $0xc8] sm:$0xff]
    %v957 = vld [vmem:[%s930 + $0xd0] sm:$0xff]
    %v958 = vld [vmem:[%s930 + $0xd8] sm:$0xff]
    %v959 = vld [vmem:[%s930 + $0xe0] sm:$0xff]
    %v960 = vld [vmem:[%s930 + $0xe8] sm:$0xff]
    %v961 = vld [vmem:[%s930 + $0xf0] sm:$0xff]
    %v962 = vld [vmem:[%s930 + $0xf8] sm:$0xff]
    %963 = vmatprep.subr.mxu0 0.0
    %964 = vmatpush1.msra.mxu0 %v946
    %965 = vmatprep.subr.mxu0 0.0
    %966 = vmatpush1.msra.mxu0 %v945
    %967 = vmatprep.subr.mxu0 0.0
    %968 = vmatpush1.msra.mxu0 %v944
    %969 = vmatprep.subr.mxu0 0.0
    %970 = vmatpush1.msra.mxu0 %v943
    %971 = vmatprep.subr.mxu0 0.0
    %972 = vmatpush1.msra.mxu0 %v942
    %973 = vmatprep.subr.mxu0 0.0
    %974 = vmatpush1.msra.mxu0 %v941
    %975 = vmatprep.subr.mxu0 0.0
    %976 = vmatpush1.msra.mxu0 %v940
    %977 = vmatprep.subr.mxu0 0.0
    %978 = vmatpush1.msra.mxu0 %v939
    %979 = vmatprep.subr.mxu0 0.0
    %980 = vmatpush1.msra.mxu0 %v938
    %981 = vmatprep.subr.mxu0 0.0
    %982 = vmatpush1.msra.mxu0 %v937
    %983 = vmatprep.subr.mxu0 0.0
    %984 = vmatpush1.msra.mxu0 %v936
    %985 = vmatprep.subr.mxu0 0.0
    %986 = vmatpush1.msra.mxu0 %v935
    %987 = vmatprep.subr.mxu0 0.0
    %988 = vmatpush1.msra.mxu0 %v934
    %989 = vmatprep.subr.mxu0 0.0
    %990 = vmatpush1.msra.mxu0 %v933
    %991 = vmatprep.subr.mxu0 0.0
    %992 = vmatpush1.msra.mxu0 %v932
    %993 = vmatprep.subr.mxu0 0.0
    %994 = vmatpush1.msra.mxu0 %v931
    %995 = vmatprep.subr.mxu0 0.0
    %996 = vmatpush2.msra.mxu0 %v962
    %997 = vmatprep.subr.mxu0 0.0
    %998 = vmatpush2.msra.mxu0 %v961
    %999 = vmatprep.subr.mxu0 0.0
    %1000 = vmatpush2.msra.mxu0 %v960
    %1001 = vmatprep.subr.mxu0 0.0
    %1002 = vmatpush2.msra.mxu0 %v959
    %1003 = vmatprep.subr.mxu0 0.0
    %1004 = vmatpush2.msra.mxu0 %v958
    %1005 = vmatprep.subr.mxu0 0.0
    %1006 = vmatpush2.msra.mxu0 %v957
    %1007 = vmatprep.subr.mxu0 0.0
    %1008 = vmatpush2.msra.mxu0 %v956
    %1009 = vmatprep.subr.mxu0 0.0
    %1010 = vmatpush2.msra.mxu0 %v955
    %1011 = vmatprep.subr.mxu0 0.0
    %1012 = vmatpush2.msra.mxu0 %v954
    %1013 = vmatprep.subr.mxu0 0.0
    %1014 = vmatpush2.msra.mxu0 %v953
    %1015 = vmatprep.subr.mxu0 0.0
    %1016 = vmatpush2.msra.mxu0 %v952
    %1017 = vmatprep.subr.mxu0 0.0
    %1018 = vmatpush2.msra.mxu0 %v951
    %1019 = vmatprep.subr.mxu0 0.0
    %1020 = vmatpush2.msra.mxu0 %v950
    %1021 = vmatprep.subr.mxu0 0.0
    %1022 = vmatpush2.msra.mxu0 %v949
    %1023 = vmatprep.subr.mxu0 0.0
    %1024 = vmatpush2.msra.mxu0 %v948
    %1025 = vmatprep.subr.mxu0 0.0
    %1026 = vmatpush2.msra.mxu0 %v947
    %1027 = vmatprep.mubr.f32.mxu0 %v928
    %1028 = vmatmul.mubr.f32.gmra.mxu0 %v928
    %v1029 = vpop.f32.mrf.mxu0
    %v1030 = vadd.f32 0.0, %v1029
    %v1031 = vpop.f32.mrf.mxu0
    %1032 = vmatprep.mubr.f32.mxu0 %v929
    %1033 = vmatmul.mubr.f32.gmra.mxu0 %v929
    %v1034 = vpop.f32.mrf.mxu0
    %v1035 = vadd.f32 0.0, %v1034
    %v1036 = vpop.f32.mrf.mxu0
    %1037 = vdwg.mxu0
    %v1038 = vadd.f32 %v926, %v1030
    %v1039 = vadd.f32 %v927, %v1035
    %v1040 = vmax.f32 %v1038, 0.0
    %v1041 = vmax.f32 %v1039, 0.0
    %1042 = vst [vmem:[#allocation12] sm:$0xff] %v1040
    %1043 = vst [vmem:[#allocation12 + $0x8] sm:$0xff] %v1041
    // Predicated region
    $region42: #{tpu_custom_call.1} parent=1 // pred_check
      _
    $region43: #{tpu_custom_call.1} parent=1 // pred_check_branch
      %1045 = sbr.rel (0) target = $region45
    $region44: #{tpu_custom_call.1} parent=1 // pred_region
      %s1047 = ssub.s32 256, 256
      %1048 = vsyncadd [#allocation5], %s1047
      %s1049 = sshll.u32 [#allocation12], 4
      %s1050 = int_to_ptr.vmem [resolvable:$true] %s1049
      %1055 = dma.vmem_to_hbm [thread:$0]  %s1050, 256, %s5, [#allocation5], 128, 128, 8
    $region45: #{tpu_custom_call.1} parent=1 // pred_fallthru
      _
    // Predicated region
    $region46: #{tpu_custom_call.1} parent=1 // pred_check
      _
    $region47: #{tpu_custom_call.1} parent=1 // pred_check_branch
      %1057 = sbr.rel (0) target = $region49
    $region48: #{tpu_custom_call.1} parent=1 // pred_region
      %1058 = dma.done [#allocation5], 256
    $region49: #{tpu_custom_call.1} parent=1 // pred_fallthru
      _
    %1059 = vsyncpa [#allocation4], 1
    %1060 = vsyncpa [#allocation7], 1
    %1061 = vsyncpa [#allocation10], 1
    %1062 = vsyncpa [#allocation5], 1

</llo_original>
